<compile_context>
chip_gen: v7x
topology: tpu7x:2x2x1
jax: 0.10.0
libtpu: 0.0.40
codegen_flags: <defaults>
</compile_context>

<pallas_src>
import functools
import numpy as np
import jax
import jax.numpy as jnp
from jax.experimental import pallas as pl
from jax.experimental.pallas import tpu as pltpu

# ---- model hyperparameters (small, consistent with the module) ----
N_NODES = 128
IN_FEATS = 32
HIDDEN = 32
OUT_FEATS = 16
NUM_HOPS = 3
NUM_HEADS = 2

NEG_SLOPE = 0.2   # LeakyReLU negative_slope
BN_EPS = 1e-5     # BatchNorm eps

OUT_PAD = 128     # lane-dense padded output width (>= OUT_FEATS + NUM_HOPS)


# ----------------------------------------------------------------------------
# Kernel
# ----------------------------------------------------------------------------
def sagn_kernel(x_ref, w1_ref, b1_ref, w2_ref, b2_ref, sel_ref,
                bn_g_ref, bn_b_ref, pw1_ref, pb1_ref, pw2_ref, pb2_ref,
                out_ref):
    H, HID, HOPS = NUM_HEADS, HIDDEN, NUM_HOPS
    RES = H * HID              # 64  (res_fc / per-head width)
    ENC = HOPS * H * HID       # 192 (encoder hidden columns, hop-major then head)
    NS = H * HOPS              # 6   (folded score columns actually used)

    # --- fused encoder layer-1: three K=32 bf16 dots against (F, 256) slabs ---
    # (res_fc is folded into columns [0:RES) of the hop-0 slab, bias-free)
    h1 = jnp.dot(x_ref[0].astype(jnp.bfloat16), w1_ref[0],
                 preferred_element_type=jnp.float32)
    for i in range(1, HOPS):
        h1 = h1 + jnp.dot(x_ref[i].astype(jnp.bfloat16), w1_ref[i],
                          preferred_element_type=jnp.float32)
    h1 = h1 + b1_ref[...]                                              # (TN, 256)

    res = h1[:, 0:RES]                                                 # pre-ReLU residual path
    h1r = jnp.maximum(h1, 0.0).astype(jnp.bfloat16)                    # ReLU (res rows ignored by w2p)

    # --- fused encoder layer-2 (block-diag over hop*head) + folded score cols ---
    # columns: [hop0(head0|head1) | hop1(...) | hop2(...)] (192) then
    #          [head0 scores hop0..2 | head1 scores hop0..2 | zero pad] (64)
    h2 = jnp.dot(h1r, w2_ref[...], preferred_element_type=jnp.float32) + b2_ref[...]   # (TN, 256)

    # --- hop-attention softmax on the 6 folded score columns (head-major) ---
    sc = h2[:, ENC:ENC + NS]                                           # (TN, 6)
    sc = jnp.where(sc >= 0.0, sc, NEG_SLOPE * sc)                      # LeakyReLU
    sc = sc - jnp.max(sc, axis=-1, keepdims=True)                      # per-row shift (softmax-invariant per head)
    e = jnp.exp(sc)
    d0 = jnp.sum(e[:, 0:HOPS], axis=-1, keepdims=True)
    d1 = jnp.sum(e[:, HOPS:NS], axis=-1, keepdims=True)
    # exact normalization (returned attention rows sum to 1 within f32)
    a_all = jnp.concatenate([e[:, 0:HOPS] / d0, e[:, HOPS:NS] / d1], axis=-1)   # (TN, 6)

    # --- attention-weighted hop mixture ---
    # broadcast per-(head,hop) weights across the 32 hidden lanes with one tiny matmul
    wb = jnp.dot(a_all, sel_ref[...], preferred_element_type=jnp.float32)       # (TN, 192)
    prod = h2[:, 0:ENC] * wb
    mix = prod[:, 0:RES] + prod[:, RES:2 * RES] + prod[:, 2 * RES:ENC] + res    # (TN, 64), head-major

    # --- MultiHeadBatchNorm (eval; 1/sqrt(1+eps) pre-folded into gamma) + ReLU ---
    mix = jnp.maximum(mix * bn_g_ref[...] + bn_b_ref[...], 0.0).astype(jnp.bfloat16)

    # --- post_encoder: block-diag over heads; head-mean folded into layer-2 ---
    p1 = jnp.dot(mix, pw1_ref[...], preferred_element_type=jnp.float32) + pb1_ref[...]
    p1 = jnp.maximum(p1, 0.0).astype(jnp.bfloat16)
    p2 = jnp.dot(p1, pw2_ref[...], preferred_element_type=jnp.float32) + pb2_ref[...]   # (TN, 16)

    attn_mean = (a_all[:, 0:HOPS] + a_all[:, HOPS:NS]) * (1.0 / H)     # (TN, 3)

    # lane-dense padded output block: [out (16) | a.mean(1) (3) | zero pad]
    out_ref[...] = jnp.zeros_like(out_ref)
    out_ref[:, 0:OUT_FEATS] = p2
    out_ref[:, OUT_FEATS:OUT_FEATS + HOPS] = attn_mean


# ----------------------------------------------------------------------------
# Wrapper
# ----------------------------------------------------------------------------
def _full_spec(shape):
    nd = len(shape)
    return pl.BlockSpec(shape, lambda i, _nd=nd: (0,) * _nd)


def _pick_tile_n(n):
    """Pick the node-tile size per chip generation."""
    kind = ""
    try:
        kind = jax.devices()[0].device_kind.lower()
    except Exception:
        pass
    tile = n
    # dual-TensorCore chips (v7x): only shard across the two cores when the
    # per-core tile is large enough to amortize duplicated weight DMA and the
    # per-grid-step pipeline overhead.
    if ("v7" in kind or "7x" in kind) and n % 16 == 0 and (n // 2) >= 256:
        tile = n // 2
    # keep per-tile VMEM footprint modest if N ever grows large
    while tile > 2048 and tile % 16 == 0:
        tile //= 2
    return tile


@functools.partial(jax.jit, static_argnames=("tile_n",))
def _sagn_jit(feats, packed, tile_n):
    num_hops, n, f = feats.shape

    weights = [packed["w1s"], packed["b1p"], packed["w2p"], packed["b2p"],
               packed["selp"], packed["bn_g"], packed["bn_b"],
               packed["pw1"], packed["pb1"], packed["pw2"], packed["pb2"]]

    # feats passed straight through (HOPS, N, F): no wrapper-side transpose/reshape
    in_specs = [pl.BlockSpec((num_hops, tile_n, f), lambda i: (0, i, 0))]
    in_specs += [_full_spec(w.shape) for w in weights]
    out_specs = pl.BlockSpec((tile_n, OUT_PAD), lambda i: (i, 0))

    combined = pl.pallas_call(
        sagn_kernel,
        out_shape=jax.ShapeDtypeStruct((n, OUT_PAD), jnp.float32),
        grid_spec=pltpu.PrefetchScalarGridSpec(
            num_scalar_prefetch=0,
            grid=(n // tile_n,),
            in_specs=in_specs,
            out_specs=out_specs,
        ),
        compiler_params=pltpu.CompilerParams(
            dimension_semantics=("parallel",)),
    )(feats, *weights)

    out = combined[:, :OUT_FEATS]
    attn = combined[:, OUT_FEATS:OUT_FEATS + num_hops].reshape(n, 1, num_hops)
    return out, attn


def sagn_forward(feats, packed, tile_n=None):
    n = feats.shape[1]
    if tile_n is None:
        tile_n = _pick_tile_n(n)
    assert n % tile_n == 0 and (tile_n % 8 == 0 or tile_n == n)
    return _sagn_jit(feats, packed, tile_n)


# ----------------------------------------------------------------------------
# Parameter packing (one-time, outside the kernel)
# ----------------------------------------------------------------------------
def pack_params(p):
    F, HID, H, HOPS, OUT = IN_FEATS, HIDDEN, NUM_HEADS, NUM_HOPS, OUT_FEATS
    RES = H * HID                     # 64
    ENC = HOPS * H * HID              # 192
    M1 = RES + ENC                    # 256
    M2 = 256                          # ENC + 64 padded score block (only first 6 cols used)
    NS = H * HOPS

    enc_w1 = np.asarray(p["enc_w1"], np.float32); enc_b1 = np.asarray(p["enc_b1"], np.float32)
    enc_w2 = np.asarray(p["enc_w2"], np.float32); enc_b2 = np.asarray(p["enc_b2"], np.float32)
    attn_l = np.asarray(p["attn_l"], np.float32); attn_r = np.asarray(p["attn_r"], np.float32)

    # ---- encoder layer-1: one (F, 256) slab per hop, res_fc folded into hop-0 slab ----
    w1s = np.zeros((HOPS, F, M1), np.float32)
    b1p = np.zeros((1, M1), np.float32)
    w1s[0, :, 0:RES] = np.asarray(p["res_w"], np.float32)   # res_fc (bias-free), reads feats[0]
    for i in range(HOPS):
        for h in range(H):
            c0 = RES + (i * H + h) * HID
            w1s[i, :, c0:c0 + HID] = enc_w1[i, h]
            b1p[0, c0:c0 + HID] = enc_b1[i, h, 0]

    # ---- encoder layer-2 block-diag (over hop*head) + folded score cols, padded to 256 ----
    w2p = np.zeros((M1, M2), np.float32)
    b2p = np.zeros((1, M2), np.float32)
    for i in range(HOPS):
        for h in range(H):
            r0 = RES + (i * H + h) * HID
            c0 = (i * H + h) * HID
            w2p[r0:r0 + HID, c0:c0 + HID] = enc_w2[i, h]
            b2p[0, c0:c0 + HID] = enc_b2[i, h, 0]
            # score_{i,h} = hidden_{i,h}.attn_l[h] + hidden_{0,h}.attn_r[h]
            sc = ENC + h * HOPS + i
            w2p[r0:r0 + HID, sc] += enc_w2[i, h] @ attn_l[h, 0]
            r00 = RES + (0 * H + h) * HID
            w2p[r00:r00 + HID, sc] += enc_w2[0, h] @ attn_r[h, 0]
            b2p[0, sc] = float(enc_b2[i, h, 0] @ attn_l[h, 0]
                               + enc_b2[0, h, 0] @ attn_r[h, 0])

    # ---- (head,hop) -> 32-lane broadcast selection matrix: wb = a_all @ selp ----
    selp = np.zeros((NS, ENC), np.float32)
    for i in range(HOPS):
        for h in range(H):
            c0 = (i * H + h) * HID
            selp[h * HOPS + i, c0:c0 + HID] = 1.0

    # ---- BatchNorm affine (1/sqrt(1+eps) folded into gamma), head-major ----
    # TODO(synk): eval-mode running stats assumed (mean=0, var=1); real running stats would need folding here.
    inv = 1.0 / np.sqrt(1.0 + BN_EPS)
    bn_g = (np.asarray(p["bn_g"], np.float32) * inv).reshape(1, RES)
    bn_b = np.asarray(p["bn_b"], np.float32).reshape(1, RES)

    # ---- post_encoder block-diag over heads; head-mean folded into layer-2 ----
    post_w1 = np.asarray(p["post_w1"], np.float32); post_b1 = np.asarray(p["post_b1"], np.float32)
    post_w2 = np.asarray(p["post_w2"], np.float32); post_b2 = np.asarray(p["post_b2"], np.float32)
    pw1 = np.zeros((RES, RES), np.float32)
    pb1 = np.zeros((1, RES), np.float32)
    pw2 = np.zeros((RES, OUT), np.float32)
    for h in range(H):
        pw1[h * HID:(h + 1) * HID, h * HID:(h + 1) * HID] = post_w1[h]
        pb1[0, h * HID:(h + 1) * HID] = post_b1[h, 0]
        pw2[h * HID:(h + 1) * HID, :] = post_w2[h] / H
    pb2 = post_b2.mean(axis=0).reshape(1, OUT).astype(np.float32)

    # matmul operands in bf16 (f32 accumulation in-kernel), biases/affine in f32
    return dict(
        w1s=jnp.asarray(w1s, jnp.bfloat16), b1p=jnp.asarray(b1p),
        w2p=jnp.asarray(w2p, jnp.bfloat16), b2p=jnp.asarray(b2p),
        selp=jnp.asarray(selp),
        bn_g=jnp.asarray(bn_g), bn_b=jnp.asarray(bn_b),
        pw1=jnp.asarray(pw1, jnp.bfloat16), pb1=jnp.asarray(pb1),
        pw2=jnp.asarray(pw2, jnp.bfloat16), pb2=jnp.asarray(pb2))


# ----------------------------------------------------------------------------
# Pure-jnp reference (same eval-mode forward pass, unpacked f32 params)
# ----------------------------------------------------------------------------
def sagn_reference(feats, params):
    num_hops, n, _ = feats.shape
    res_all = feats[0] @ params["res_w"]                                    # (N, H*hid)
    out = jnp.zeros((n, OUT_FEATS), jnp.float32)
    attn = jnp.zeros((n, num_hops), jnp.float32)
    for h in range(NUM_HEADS):
        hidden_h = []
        for i in range(num_hops):
            h1 = jnp.maximum(feats[i] @ params["enc_w1"][i, h] + params["enc_b1"][i, h], 0.0)
            hidden_h.append(h1 @ params["enc_w2"][i, h] + params["enc_b2"][i, h])
        focal = hidden_h[0]
        a_r = jnp.sum(focal * params["attn_r"][h], -1, keepdims=True)
        scores = jnp.concatenate(
            [jnp.sum(hh * params["attn_l"][h], -1, keepdims=True) + a_r for hh in hidden_h],
            axis=-1)
        scores = jnp.where(scores >= 0.0, scores, NEG_SLOPE * scores)
        a = jax.nn.softmax(scores, axis=-1)
        mix = sum(hidden_h[i] * a[:, i:i + 1] for i in range(num_hops))
        mix = mix + res_all[:, h * HIDDEN:(h + 1) * HIDDEN]
        mix = mix / jnp.sqrt(1.0 + BN_EPS) * params["bn_g"][h] + params["bn_b"][h]
        mix = jnp.maximum(mix, 0.0)
        p1 = jnp.maximum(mix @ params["post_w1"][h] + params["post_b1"][h], 0.0)
        p2 = p1 @ params["post_w2"][h] + params["post_b2"][h]
        out = out + p2 / NUM_HEADS
        attn = attn + a / NUM_HEADS
    return out, attn.reshape(n, 1, num_hops)


def init_params(key):
    ks = jax.random.split(key, 16)
    s = 0.1
    p = {
        "enc_w1": s * jax.random.normal(ks[0], (NUM_HOPS, NUM_HEADS, IN_FEATS, HIDDEN), jnp.float32),
        "enc_b1": s * jax.random.normal(ks[1], (NUM_HOPS, NUM_HEADS, 1, HIDDEN), jnp.float32),
        "enc_w2": s * jax.random.normal(ks[2], (NUM_HOPS, NUM_HEADS, HIDDEN, HIDDEN), jnp.float32),
        "enc_b2": s * jax.random.normal(ks[3], (NUM_HOPS, NUM_HEADS, 1, HIDDEN), jnp.float32),
        "attn_l": s * jax.random.normal(ks[4], (NUM_HEADS, 1, HIDDEN), jnp.float32),
        "attn_r": s * jax.random.normal(ks[5], (NUM_HEADS, 1, HIDDEN), jnp.float32),
        "res_w": s * jax.random.normal(ks[6], (IN_FEATS, NUM_HEADS * HIDDEN), jnp.float32),
        "bn_g": 1.0 + s * jax.random.normal(ks[7], (NUM_HEADS, 1, HIDDEN), jnp.float32),
        "bn_b": s * jax.random.normal(ks[8], (NUM_HEADS, 1, HIDDEN), jnp.float32),
        "post_w1": s * jax.random.normal(ks[9], (NUM_HEADS, HIDDEN, HIDDEN), jnp.float32),
        "post_b1": s * jax.random.normal(ks[10], (NUM_HEADS, 1, HIDDEN), jnp.float32),
        "post_w2": s * jax.random.normal(ks[11], (NUM_HEADS, HIDDEN, OUT_FEATS), jnp.float32),
        "post_b2": s * jax.random.normal(ks[12], (NUM_HEADS, 1, OUT_FEATS), jnp.float32),
    }
    # TODO(synk): pos_emb and label_fc exist in __init__ but are unused in forward(); not materialized.
    return p


if __name__ == "__main__":
    key = jax.random.PRNGKey(0)
    kf, kp = jax.random.split(key)
    # feats: list of num_hops tensors (N, in_feats), stacked on axis 0
    feats = jax.random.normal(kf, (NUM_HOPS, N_NODES, IN_FEATS), jnp.float32)
    params = init_params(kp)
    packed = pack_params(params)

    out, attn = sagn_forward(feats, packed)
    jax.block_until_ready((out, attn))

    ref_out, ref_attn = sagn_reference(feats, params)
    assert out.shape == (N_NODES, OUT_FEATS)
    assert attn.shape == (N_NODES, 1, NUM_HOPS)
    # tolerance covers bf16 matmul operands (f32 accumulation); softmax norm is exact
    assert jnp.allclose(out, ref_out, rtol=2e-2, atol=2e-2), float(jnp.max(jnp.abs(out - ref_out)))
    assert jnp.allclose(attn, ref_attn, rtol=2e-2, atol=2e-2), float(jnp.max(jnp.abs(attn - ref_attn)))
    print("KERNEL_OK")
</pallas_src>

<mosaic_0001>
module attributes {stable_mosaic.version = 11 : i64} {
  func.func @sagn_kernel(%arg0: i32, %arg1: memref<3x128x32xf32, #tpu.memory_space<vmem>>, %arg2: memref<3x32x256xbf16, #tpu.memory_space<vmem>>, %arg3: memref<1x256xf32, #tpu.memory_space<vmem>>, %arg4: memref<256x256xbf16, #tpu.memory_space<vmem>>, %arg5: memref<1x256xf32, #tpu.memory_space<vmem>>, %arg6: memref<6x192xf32, #tpu.memory_space<vmem>>, %arg7: memref<1x64xf32, #tpu.memory_space<vmem>>, %arg8: memref<1x64xf32, #tpu.memory_space<vmem>>, %arg9: memref<64x64xbf16, #tpu.memory_space<vmem>>, %arg10: memref<1x64xf32, #tpu.memory_space<vmem>>, %arg11: memref<64x16xbf16, #tpu.memory_space<vmem>>, %arg12: memref<1x16xf32, #tpu.memory_space<vmem>>, %arg13: memref<128x128xf32, #tpu.memory_space<vmem>>) attributes {dimension_semantics = [#tpu.dimension_semantics<parallel>], iteration_bounds = array<i64: 1>, scalar_prefetch = 0 : i64, scratch_operands = 0 : i64, tpu.core_type = #tpu.core_type<tc>, window_params = [{transform_indices = @transform_0, window_bounds = array<i64: 3, 128, 32>}, {pipeline_mode = #tpu.pipeline_mode<synchronous>, transform_indices = @transform_1, window_bounds = array<i64: 3, 32, 256>}, {pipeline_mode = #tpu.pipeline_mode<synchronous>, transform_indices = @transform_2, window_bounds = array<i64: 1, 256>}, {pipeline_mode = #tpu.pipeline_mode<synchronous>, transform_indices = @transform_3, window_bounds = array<i64: 256, 256>}, {pipeline_mode = #tpu.pipeline_mode<synchronous>, transform_indices = @transform_4, window_bounds = array<i64: 1, 256>}, {pipeline_mode = #tpu.pipeline_mode<synchronous>, transform_indices = @transform_5, window_bounds = array<i64: 6, 192>}, {pipeline_mode = #tpu.pipeline_mode<synchronous>, transform_indices = @transform_6, window_bounds = array<i64: 1, 64>}, {pipeline_mode = #tpu.pipeline_mode<synchronous>, transform_indices = @transform_7, window_bounds = array<i64: 1, 64>}, {pipeline_mode = #tpu.pipeline_mode<synchronous>, transform_indices = @transform_8, window_bounds = array<i64: 64, 64>}, {pipeline_mode = #tpu.pipeline_mode<synchronous>, transform_indices = @transform_9, window_bounds = array<i64: 1, 64>}, {pipeline_mode = #tpu.pipeline_mode<synchronous>, transform_indices = @transform_10, window_bounds = array<i64: 64, 16>}, {pipeline_mode = #tpu.pipeline_mode<synchronous>, transform_indices = @transform_11, window_bounds = array<i64: 1, 16>}, {transform_indices = @transform_12, window_bounds = array<i64: 128, 128>}]} {
    %c0 = arith.constant 0 : index
    %c0_0 = arith.constant 0 : index
    %c0_1 = arith.constant 0 : index
    %0 = vector.load %arg1[%c0, %c0_0, %c0_1] : memref<3x128x32xf32, #tpu.memory_space<vmem>>, vector<1x128x32xf32>
    %1 = vector.shape_cast %0 : vector<1x128x32xf32> to vector<128x32xf32>
    %2 = arith.truncf %1 : vector<128x32xf32> to vector<128x32xbf16>
    %c0_2 = arith.constant 0 : index
    %c0_3 = arith.constant 0 : index
    %c0_4 = arith.constant 0 : index
    %3 = vector.load %arg2[%c0_2, %c0_3, %c0_4] : memref<3x32x256xbf16, #tpu.memory_space<vmem>>, vector<1x32x256xbf16>
    %4 = vector.shape_cast %3 : vector<1x32x256xbf16> to vector<32x256xbf16>
    %cst = arith.constant dense<0.000000e+00> : vector<128x256xf32>
    %5 = tpu.matmul %2, %4, %cst {dimension_numbers = #tpu.dot_dimension_numbers<[1], [0], [0], [1], [0, 0, 1, 1], [], []>} : vector<128x32xbf16>, vector<32x256xbf16>, vector<128x256xf32> -> vector<128x256xf32>
    %c1 = arith.constant 1 : index
    %c0_5 = arith.constant 0 : index
    %c0_6 = arith.constant 0 : index
    %6 = vector.load %arg1[%c1, %c0_5, %c0_6] : memref<3x128x32xf32, #tpu.memory_space<vmem>>, vector<1x128x32xf32>
    %7 = vector.shape_cast %6 : vector<1x128x32xf32> to vector<128x32xf32>
    %8 = arith.truncf %7 : vector<128x32xf32> to vector<128x32xbf16>
    %c1_7 = arith.constant 1 : index
    %c0_8 = arith.constant 0 : index
    %c0_9 = arith.constant 0 : index
    %9 = vector.load %arg2[%c1_7, %c0_8, %c0_9] : memref<3x32x256xbf16, #tpu.memory_space<vmem>>, vector<1x32x256xbf16>
    %10 = vector.shape_cast %9 : vector<1x32x256xbf16> to vector<32x256xbf16>
    %cst_10 = arith.constant dense<0.000000e+00> : vector<128x256xf32>
    %11 = tpu.matmul %8, %10, %cst_10 {dimension_numbers = #tpu.dot_dimension_numbers<[1], [0], [0], [1], [0, 0, 1, 1], [], []>} : vector<128x32xbf16>, vector<32x256xbf16>, vector<128x256xf32> -> vector<128x256xf32>
    %12 = arith.addf %5, %11 : vector<128x256xf32>
    %c2 = arith.constant 2 : index
    %c0_11 = arith.constant 0 : index
    %c0_12 = arith.constant 0 : index
    %13 = vector.load %arg1[%c2, %c0_11, %c0_12] : memref<3x128x32xf32, #tpu.memory_space<vmem>>, vector<1x128x32xf32>
    %14 = vector.shape_cast %13 : vector<1x128x32xf32> to vector<128x32xf32>
    %15 = arith.truncf %14 : vector<128x32xf32> to vector<128x32xbf16>
    %c2_13 = arith.constant 2 : index
    %c0_14 = arith.constant 0 : index
    %c0_15 = arith.constant 0 : index
    %16 = vector.load %arg2[%c2_13, %c0_14, %c0_15] : memref<3x32x256xbf16, #tpu.memory_space<vmem>>, vector<1x32x256xbf16>
    %17 = vector.shape_cast %16 : vector<1x32x256xbf16> to vector<32x256xbf16>
    %cst_16 = arith.constant dense<0.000000e+00> : vector<128x256xf32>
    %18 = tpu.matmul %15, %17, %cst_16 {dimension_numbers = #tpu.dot_dimension_numbers<[1], [0], [0], [1], [0, 0, 1, 1], [], []>} : vector<128x32xbf16>, vector<32x256xbf16>, vector<128x256xf32> -> vector<128x256xf32>
    %19 = arith.addf %12, %18 : vector<128x256xf32>
    %c0_17 = arith.constant 0 : index
    %c0_18 = arith.constant 0 : index
    %20 = vector.load %arg3[%c0_17, %c0_18] : memref<1x256xf32, #tpu.memory_space<vmem>>, vector<1x256xf32>
    %21 = vector.broadcast %20 : vector<1x256xf32> to vector<128x256xf32>
    %22 = arith.addf %19, %21 : vector<128x256xf32>
    %23 = vector.extract_strided_slice %22 {offsets = [0, 0], sizes = [128, 64], strides = [1, 1]} : vector<128x256xf32> to vector<128x64xf32>
    %cst_19 = arith.constant 0.000000e+00 : f32
    %24 = vector.broadcast %cst_19 : f32 to vector<128x256xf32>
    %25 = arith.maximumf %22, %24 : vector<128x256xf32>
    %26 = arith.truncf %25 : vector<128x256xf32> to vector<128x256xbf16>
    %c0_20 = arith.constant 0 : index
    %c0_21 = arith.constant 0 : index
    %27 = vector.load %arg4[%c0_20, %c0_21] : memref<256x256xbf16, #tpu.memory_space<vmem>>, vector<256x256xbf16>
    %cst_22 = arith.constant dense<0.000000e+00> : vector<128x256xf32>
    %28 = tpu.matmul %26, %27, %cst_22 {dimension_numbers = #tpu.dot_dimension_numbers<[1], [0], [0], [1], [0, 0, 1, 1], [], []>} : vector<128x256xbf16>, vector<256x256xbf16>, vector<128x256xf32> -> vector<128x256xf32>
    %c0_23 = arith.constant 0 : index
    %c0_24 = arith.constant 0 : index
    %29 = vector.load %arg5[%c0_23, %c0_24] : memref<1x256xf32, #tpu.memory_space<vmem>>, vector<1x256xf32>
    %30 = vector.broadcast %29 : vector<1x256xf32> to vector<128x256xf32>
    %31 = arith.addf %28, %30 : vector<128x256xf32>
    %32 = vector.extract_strided_slice %31 {offsets = [0, 192], sizes = [128, 6], strides = [1, 1]} : vector<128x256xf32> to vector<128x6xf32>
    %cst_25 = arith.constant 0.000000e+00 : f32
    %33 = vector.broadcast %cst_25 : f32 to vector<128x6xf32>
    %34 = arith.cmpf oge, %32, %33 : vector<128x6xf32>
    %cst_26 = arith.constant 2.000000e-01 : f32
    %35 = vector.broadcast %cst_26 : f32 to vector<128x6xf32>
    %36 = arith.mulf %35, %32 : vector<128x6xf32>
    %37 = arith.select %34, %32, %36 : vector<128x6xi1>, vector<128x6xf32>
    %cst_27 = arith.constant dense<0xFF800000> : vector<128xf32>
    %38 = vector.multi_reduction <maximumf>, %37, %cst_27 [1] : vector<128x6xf32> to vector<128xf32>
    %39 = vector.shape_cast %38 : vector<128xf32> to vector<128x1xf32>
    %40 = vector.broadcast %39 : vector<128x1xf32> to vector<128x6xf32>
    %41 = arith.subf %37, %40 : vector<128x6xf32>
    %42 = math.exp %41 : vector<128x6xf32>
    %43 = vector.extract_strided_slice %42 {offsets = [0, 0], sizes = [128, 3], strides = [1, 1]} : vector<128x6xf32> to vector<128x3xf32>
    %cst_28 = arith.constant dense<0.000000e+00> : vector<128xf32>
    %44 = vector.multi_reduction <add>, %43, %cst_28 [1] : vector<128x3xf32> to vector<128xf32>
    %45 = vector.shape_cast %44 : vector<128xf32> to vector<128x1xf32>
    %46 = vector.extract_strided_slice %42 {offsets = [0, 3], sizes = [128, 3], strides = [1, 1]} : vector<128x6xf32> to vector<128x3xf32>
    %cst_29 = arith.constant dense<0.000000e+00> : vector<128xf32>
    %47 = vector.multi_reduction <add>, %46, %cst_29 [1] : vector<128x3xf32> to vector<128xf32>
    %48 = vector.shape_cast %47 : vector<128xf32> to vector<128x1xf32>
    %49 = vector.extract_strided_slice %42 {offsets = [0, 0], sizes = [128, 3], strides = [1, 1]} : vector<128x6xf32> to vector<128x3xf32>
    %50 = vector.broadcast %45 : vector<128x1xf32> to vector<128x3xf32>
    %51 = arith.divf %49, %50 : vector<128x3xf32>
    %52 = vector.extract_strided_slice %42 {offsets = [0, 3], sizes = [128, 3], strides = [1, 1]} : vector<128x6xf32> to vector<128x3xf32>
    %53 = vector.broadcast %48 : vector<128x1xf32> to vector<128x3xf32>
    %54 = arith.divf %52, %53 : vector<128x3xf32>
    %55 = tpu.concatenate %51, %54 in 1 : vector<128x3xf32>, vector<128x3xf32> -> vector<128x6xf32>
    %c0_30 = arith.constant 0 : index
    %c0_31 = arith.constant 0 : index
    %56 = vector.load %arg6[%c0_30, %c0_31] : memref<6x192xf32, #tpu.memory_space<vmem>>, vector<6x192xf32>
    %cst_32 = arith.constant dense<0.000000e+00> : vector<128x192xf32>
    %57 = tpu.matmul %55, %56, %cst_32 {dimension_numbers = #tpu.dot_dimension_numbers<[1], [0], [0], [1], [0, 0, 1, 1], [], []>} : vector<128x6xf32>, vector<6x192xf32>, vector<128x192xf32> -> vector<128x192xf32>
    %58 = vector.extract_strided_slice %31 {offsets = [0, 0], sizes = [128, 192], strides = [1, 1]} : vector<128x256xf32> to vector<128x192xf32>
    %59 = arith.mulf %58, %57 : vector<128x192xf32>
    %60 = vector.extract_strided_slice %59 {offsets = [0, 0], sizes = [128, 64], strides = [1, 1]} : vector<128x192xf32> to vector<128x64xf32>
    %61 = vector.extract_strided_slice %59 {offsets = [0, 64], sizes = [128, 64], strides = [1, 1]} : vector<128x192xf32> to vector<128x64xf32>
    %62 = arith.addf %60, %61 : vector<128x64xf32>
    %63 = vector.extract_strided_slice %59 {offsets = [0, 128], sizes = [128, 64], strides = [1, 1]} : vector<128x192xf32> to vector<128x64xf32>
    %64 = arith.addf %62, %63 : vector<128x64xf32>
    %65 = arith.addf %64, %23 : vector<128x64xf32>
    %c0_33 = arith.constant 0 : index
    %c0_34 = arith.constant 0 : index
    %66 = vector.load %arg7[%c0_33, %c0_34] : memref<1x64xf32, #tpu.memory_space<vmem>>, vector<1x64xf32>
    %67 = vector.broadcast %66 : vector<1x64xf32> to vector<128x64xf32>
    %68 = arith.mulf %65, %67 : vector<128x64xf32>
    %c0_35 = arith.constant 0 : index
    %c0_36 = arith.constant 0 : index
    %69 = vector.load %arg8[%c0_35, %c0_36] : memref<1x64xf32, #tpu.memory_space<vmem>>, vector<1x64xf32>
    %70 = vector.broadcast %69 : vector<1x64xf32> to vector<128x64xf32>
    %71 = arith.addf %68, %70 : vector<128x64xf32>
    %cst_37 = arith.constant 0.000000e+00 : f32
    %72 = vector.broadcast %cst_37 : f32 to vector<128x64xf32>
    %73 = arith.maximumf %71, %72 : vector<128x64xf32>
    %74 = arith.truncf %73 : vector<128x64xf32> to vector<128x64xbf16>
    %c0_38 = arith.constant 0 : index
    %c0_39 = arith.constant 0 : index
    %75 = vector.load %arg9[%c0_38, %c0_39] : memref<64x64xbf16, #tpu.memory_space<vmem>>, vector<64x64xbf16>
    %cst_40 = arith.constant dense<0.000000e+00> : vector<128x64xf32>
    %76 = tpu.matmul %74, %75, %cst_40 {dimension_numbers = #tpu.dot_dimension_numbers<[1], [0], [0], [1], [0, 0, 1, 1], [], []>} : vector<128x64xbf16>, vector<64x64xbf16>, vector<128x64xf32> -> vector<128x64xf32>
    %c0_41 = arith.constant 0 : index
    %c0_42 = arith.constant 0 : index
    %77 = vector.load %arg10[%c0_41, %c0_42] : memref<1x64xf32, #tpu.memory_space<vmem>>, vector<1x64xf32>
    %78 = vector.broadcast %77 : vector<1x64xf32> to vector<128x64xf32>
    %79 = arith.addf %76, %78 : vector<128x64xf32>
    %cst_43 = arith.constant 0.000000e+00 : f32
    %80 = vector.broadcast %cst_43 : f32 to vector<128x64xf32>
    %81 = arith.maximumf %79, %80 : vector<128x64xf32>
    %82 = arith.truncf %81 : vector<128x64xf32> to vector<128x64xbf16>
    %c0_44 = arith.constant 0 : index
    %c0_45 = arith.constant 0 : index
    %83 = vector.load %arg11[%c0_44, %c0_45] : memref<64x16xbf16, #tpu.memory_space<vmem>>, vector<64x16xbf16>
    %cst_46 = arith.constant dense<0.000000e+00> : vector<128x16xf32>
    %84 = tpu.matmul %82, %83, %cst_46 {dimension_numbers = #tpu.dot_dimension_numbers<[1], [0], [0], [1], [0, 0, 1, 1], [], []>} : vector<128x64xbf16>, vector<64x16xbf16>, vector<128x16xf32> -> vector<128x16xf32>
    %c0_47 = arith.constant 0 : index
    %c0_48 = arith.constant 0 : index
    %85 = vector.load %arg12[%c0_47, %c0_48] : memref<1x16xf32, #tpu.memory_space<vmem>>, vector<1x16xf32>
    %86 = vector.broadcast %85 : vector<1x16xf32> to vector<128x16xf32>
    %87 = arith.addf %84, %86 : vector<128x16xf32>
    %88 = vector.extract_strided_slice %55 {offsets = [0, 0], sizes = [128, 3], strides = [1, 1]} : vector<128x6xf32> to vector<128x3xf32>
    %89 = vector.extract_strided_slice %55 {offsets = [0, 3], sizes = [128, 3], strides = [1, 1]} : vector<128x6xf32> to vector<128x3xf32>
    %90 = arith.addf %88, %89 : vector<128x3xf32>
    %cst_49 = arith.constant 5.000000e-01 : f32
    %91 = vector.broadcast %cst_49 : f32 to vector<128x3xf32>
    %92 = arith.mulf %90, %91 : vector<128x3xf32>
    %cst_50 = arith.constant 0.000000e+00 : f32
    %93 = vector.broadcast %cst_50 : f32 to vector<128x128xf32>
    %c0_51 = arith.constant 0 : index
    %c0_52 = arith.constant 0 : index
    %94 = vector.load %arg13[%c0_51, %c0_52] : memref<128x128xf32, #tpu.memory_space<vmem>>, vector<128x128xf32>
    tpu.vector_store %arg13[%c0_51, %c0_52], %93 {strides = array<i32>} : memref<128x128xf32, #tpu.memory_space<vmem>>, vector<128x128xf32>,
    %c0_53 = arith.constant 0 : index
    %c0_54 = arith.constant 0 : index
    %95 = vector.load %arg13[%c0_53, %c0_54] : memref<128x128xf32, #tpu.memory_space<vmem>>, vector<128x16xf32>
    tpu.vector_store %arg13[%c0_53, %c0_54], %87 {strides = array<i32>} : memref<128x128xf32, #tpu.memory_space<vmem>>, vector<128x16xf32>,
    %c0_55 = arith.constant 0 : index
    %c16 = arith.constant 16 : index
    %96 = vector.load %arg13[%c0_55, %c16] : memref<128x128xf32, #tpu.memory_space<vmem>>, vector<128x3xf32>
    tpu.vector_store %arg13[%c0_55, %c16], %92 {strides = array<i32>} : memref<128x128xf32, #tpu.memory_space<vmem>>, vector<128x3xf32>,
    return
  }
  func.func @transform_0(%arg0: i32) -> (i32, i32, i32) {
    %c0_i32 = arith.constant 0 : i32
    %c0_i32_0 = arith.constant 0 : i32
    %c0_i32_1 = arith.constant 0 : i32
    return %c0_i32, %arg0, %c0_i32_0 : i32, i32, i32
  }
  func.func @transform_1(%arg0: i32) -> (i32, i32, i32) {
    %c0_i32 = arith.constant 0 : i32
    %c0_i32_0 = arith.constant 0 : i32
    %c0_i32_1 = arith.constant 0 : i32
    %c0_i32_2 = arith.constant 0 : i32
    return %c0_i32, %c0_i32_0, %c0_i32_1 : i32, i32, i32
  }
  func.func @transform_2(%arg0: i32) -> (i32, i32) {
    %c0_i32 = arith.constant 0 : i32
    %c0_i32_0 = arith.constant 0 : i32
    %c0_i32_1 = arith.constant 0 : i32
    return %c0_i32, %c0_i32_0 : i32, i32
  }
  func.func @transform_3(%arg0: i32) -> (i32, i32) {
    %c0_i32 = arith.constant 0 : i32
    %c0_i32_0 = arith.constant 0 : i32
    %c0_i32_1 = arith.constant 0 : i32
    return %c0_i32, %c0_i32_0 : i32, i32
  }
  func.func @transform_4(%arg0: i32) -> (i32, i32) {
    %c0_i32 = arith.constant 0 : i32
    %c0_i32_0 = arith.constant 0 : i32
    %c0_i32_1 = arith.constant 0 : i32
    return %c0_i32, %c0_i32_0 : i32, i32
  }
  func.func @transform_5(%arg0: i32) -> (i32, i32) {
    %c0_i32 = arith.constant 0 : i32
    %c0_i32_0 = arith.constant 0 : i32
    %c0_i32_1 = arith.constant 0 : i32
    return %c0_i32, %c0_i32_0 : i32, i32
  }
  func.func @transform_6(%arg0: i32) -> (i32, i32) {
    %c0_i32 = arith.constant 0 : i32
    %c0_i32_0 = arith.constant 0 : i32
    %c0_i32_1 = arith.constant 0 : i32
    return %c0_i32, %c0_i32_0 : i32, i32
  }
  func.func @transform_7(%arg0: i32) -> (i32, i32) {
    %c0_i32 = arith.constant 0 : i32
    %c0_i32_0 = arith.constant 0 : i32
    %c0_i32_1 = arith.constant 0 : i32
    return %c0_i32, %c0_i32_0 : i32, i32
  }
  func.func @transform_8(%arg0: i32) -> (i32, i32) {
    %c0_i32 = arith.constant 0 : i32
    %c0_i32_0 = arith.constant 0 : i32
    %c0_i32_1 = arith.constant 0 : i32
    return %c0_i32, %c0_i32_0 : i32, i32
  }
  func.func @transform_9(%arg0: i32) -> (i32, i32) {
    %c0_i32 = arith.constant 0 : i32
    %c0_i32_0 = arith.constant 0 : i32
    %c0_i32_1 = arith.constant 0 : i32
    return %c0_i32, %c0_i32_0 : i32, i32
  }
  func.func @transform_10(%arg0: i32) -> (i32, i32) {
    %c0_i32 = arith.constant 0 : i32
    %c0_i32_0 = arith.constant 0 : i32
    %c0_i32_1 = arith.constant 0 : i32
    return %c0_i32, %c0_i32_0 : i32, i32
  }
  func.func @transform_11(%arg0: i32) -> (i32, i32) {
    %c0_i32 = arith.constant 0 : i32
    %c0_i32_0 = arith.constant 0 : i32
    %c0_i32_1 = arith.constant 0 : i32
    return %c0_i32, %c0_i32_0 : i32, i32
  }
  func.func @transform_12(%arg0: i32) -> (i32, i32) {
    %c0_i32 = arith.constant 0 : i32
    %c0_i32_0 = arith.constant 0 : i32
    return %arg0, %c0_i32 : i32, i32
  }
}

</mosaic_0001>

<llo_original>
// kernel: _sagn_jit.1
$region0: #{_sagn_jit.1}
  #allocation0 [shape = 'u32[]', space=smem, size = 0x4, offset = 0x4, fixed_abs, tag = 'smem constant byte address 0x4 - core index']
  #allocation1 [shape = 'u32[144,128]{1,0:T(1,128)}', space=vmem, size = 0x12000, scoped, tag = 'internal scratch']
  %s0 = inlined_call_operand.vmem [shape: f32[3,128,32], index: 0, kind: input, shape index: {}]
  %s1 = inlined_call_operand.vmem [shape: bf16[3,32,256], index: 1, kind: input, shape index: {}]
  %s2 = inlined_call_operand.vmem [shape: f32[1,256], index: 2, kind: input, shape index: {}]
  %s3 = inlined_call_operand.vmem [shape: bf16[256,256], index: 3, kind: input, shape index: {}]
  %s4 = inlined_call_operand.vmem [shape: f32[1,256], index: 4, kind: input, shape index: {}]
  %s5 = inlined_call_operand.vmem [shape: f32[6,192], index: 5, kind: input, shape index: {}]
  %s6 = inlined_call_operand.vmem [shape: f32[1,64], index: 6, kind: input, shape index: {}]
  %s7 = inlined_call_operand.vmem [shape: f32[1,64], index: 7, kind: input, shape index: {}]
  %s8 = inlined_call_operand.vmem [shape: bf16[64,64], index: 8, kind: input, shape index: {}]
  %s9 = inlined_call_operand.vmem [shape: f32[1,64], index: 9, kind: input, shape index: {}]
  %s10 = inlined_call_operand.vmem [shape: bf16[64,16], index: 10, kind: input, shape index: {}]
  %s11 = inlined_call_operand.vmem [shape: f32[1,16], index: 11, kind: input, shape index: {}]
  %s12 = inlined_call_operand.vmem [shape: f32[128,128], index: 12, kind: output, shape index: {}]
  %s13 = sld [smem:[#allocation0]]
  $region58: #{_sagn_jit.1} parent=0
    _
  %s15 = ssub.s32 1, %s13
  %s16 = scalar_select 0, %s15, %s13
  // Predicated region
  $region2: #{_sagn_jit.1} parent=0 // pred_check
    _
  $region3: #{_sagn_jit.1} parent=0 // pred_check_branch
    %18 = sbr.rel (0) target = $region5
  $region4: #{_sagn_jit.1} parent=0 // pred_region
    _
  $region5: #{_sagn_jit.1} parent=0 // pred_fallthru
    _
  // Predicated region
  $region6: #{_sagn_jit.1} parent=0 // pred_check
    _
  $region7: #{_sagn_jit.1} parent=0 // pred_check_branch
    %20 = sbr.rel (0) target = $region9
  $region8: #{_sagn_jit.1} parent=0 // pred_region
    _
  $region9: #{_sagn_jit.1} parent=0 // pred_fallthru
    _
  // Predicated region
  $region10: #{_sagn_jit.1} parent=0 // pred_check
    _
  $region11: #{_sagn_jit.1} parent=0 // pred_check_branch
    %22 = sbr.rel (0) target = $region13
  $region12: #{_sagn_jit.1} parent=0 // pred_region
    _
  $region13: #{_sagn_jit.1} parent=0 // pred_fallthru
    _
  // Predicated region
  $region14: #{_sagn_jit.1} parent=0 // pred_check
    _
  $region15: #{_sagn_jit.1} parent=0 // pred_check_branch
    %24 = sbr.rel (0) target = $region17
  $region16: #{_sagn_jit.1} parent=0 // pred_region
    _
  $region17: #{_sagn_jit.1} parent=0 // pred_fallthru
    _
  // Predicated region
  $region18: #{_sagn_jit.1} parent=0 // pred_check
    _
  $region19: #{_sagn_jit.1} parent=0 // pred_check_branch
    %26 = sbr.rel (0) target = $region21
  $region20: #{_sagn_jit.1} parent=0 // pred_region
    _
  $region21: #{_sagn_jit.1} parent=0 // pred_fallthru
    _
  // Predicated region
  $region22: #{_sagn_jit.1} parent=0 // pred_check
    _
  $region23: #{_sagn_jit.1} parent=0 // pred_check_branch
    %28 = sbr.rel (0) target = $region25
  $region24: #{_sagn_jit.1} parent=0 // pred_region
    _
  $region25: #{_sagn_jit.1} parent=0 // pred_fallthru
    _
  // Predicated region
  $region26: #{_sagn_jit.1} parent=0 // pred_check
    _
  $region27: #{_sagn_jit.1} parent=0 // pred_check_branch
    %30 = sbr.rel (0) target = $region29
  $region28: #{_sagn_jit.1} parent=0 // pred_region
    _
  $region29: #{_sagn_jit.1} parent=0 // pred_fallthru
    _
  // Predicated region
  $region30: #{_sagn_jit.1} parent=0 // pred_check
    _
  $region31: #{_sagn_jit.1} parent=0 // pred_check_branch
    %32 = sbr.rel (0) target = $region33
  $region32: #{_sagn_jit.1} parent=0 // pred_region
    _
  $region33: #{_sagn_jit.1} parent=0 // pred_fallthru
    _
  // Predicated region
  $region34: #{_sagn_jit.1} parent=0 // pred_check
    _
  $region35: #{_sagn_jit.1} parent=0 // pred_check_branch
    %34 = sbr.rel (0) target = $region37
  $region36: #{_sagn_jit.1} parent=0 // pred_region
    _
  $region37: #{_sagn_jit.1} parent=0 // pred_fallthru
    _
  // Predicated region
  $region38: #{_sagn_jit.1} parent=0 // pred_check
    _
  $region39: #{_sagn_jit.1} parent=0 // pred_check_branch
    %36 = sbr.rel (0) target = $region41
  $region40: #{_sagn_jit.1} parent=0 // pred_region
    _
  $region41: #{_sagn_jit.1} parent=0 // pred_fallthru
    _
  // Predicated region
  $region42: #{_sagn_jit.1} parent=0 // pred_check
    _
  $region43: #{_sagn_jit.1} parent=0 // pred_check_branch
    %38 = sbr.rel (0) target = $region45
  $region44: #{_sagn_jit.1} parent=0 // pred_region
    _
  $region45: #{_sagn_jit.1} parent=0 // pred_fallthru
    _
  // Predicated region
  $region46: #{_sagn_jit.1} parent=0 // pred_check
    _
  $region47: #{_sagn_jit.1} parent=0 // pred_check_branch
    %40 = sbr.rel (0) target = $region49
  $region48: #{_sagn_jit.1} parent=0 // pred_region
    _
  $region49: #{_sagn_jit.1} parent=0 // pred_fallthru
    _
  %v42 = vld [vmem:[%s0] sm:$0xff]
  %v43 = vld [vmem:[%s0 + $0x8] sm:$0xff]
  %v44 = vld [vmem:[%s0 + $0x10] sm:$0xff]
  %v45 = vld [vmem:[%s0 + $0x18] sm:$0xff]
  %v46 = vld [vmem:[%s0 + $0x20] sm:$0xff]
  %v47 = vld [vmem:[%s0 + $0x28] sm:$0xff]
  %v48 = vld [vmem:[%s0 + $0x30] sm:$0xff]
  %v49 = vld [vmem:[%s0 + $0x38] sm:$0xff]
  %v50 = vld [vmem:[%s0 + $0x40] sm:$0xff]
  %v51 = vld [vmem:[%s0 + $0x48] sm:$0xff]
  %v52 = vld [vmem:[%s0 + $0x50] sm:$0xff]
  %v53 = vld [vmem:[%s0 + $0x58] sm:$0xff]
  %v54 = vld [vmem:[%s0 + $0x60] sm:$0xff]
  %v55 = vld [vmem:[%s0 + $0x68] sm:$0xff]
  %v56 = vld [vmem:[%s0 + $0x70] sm:$0xff]
  %v57 = vld [vmem:[%s0 + $0x78] sm:$0xff]
  %v58 = vpack.c.bf16 %v43, %v42
  %v59 = vpack.c.bf16 %v45, %v44
  %v60 = vpack.c.bf16 %v47, %v46
  %v61 = vpack.c.bf16 %v49, %v48
  %v62 = vpack.c.bf16 %v51, %v50
  %v63 = vpack.c.bf16 %v53, %v52
  %v64 = vpack.c.bf16 %v55, %v54
  %v65 = vpack.c.bf16 %v57, %v56
  %v66 = vld [vmem:[%s1] sm:$0xff]
  %v67 = vld [vmem:[%s1 + $0x8] sm:$0xff]
  %v68 = vld [vmem:[%s1 + $0x10] sm:$0xff]
  %v69 = vld [vmem:[%s1 + $0x18] sm:$0xff]
  %s70 = scalar_lea.vmem %s0, 128
  %v71 = vld [vmem:[%s70] sm:$0xff]
  %v72 = vld [vmem:[%s70 + $0x8] sm:$0xff]
  %v73 = vld [vmem:[%s70 + $0x10] sm:$0xff]
  %v74 = vld [vmem:[%s70 + $0x18] sm:$0xff]
  %v75 = vld [vmem:[%s70 + $0x20] sm:$0xff]
  %v76 = vld [vmem:[%s70 + $0x28] sm:$0xff]
  %v77 = vld [vmem:[%s70 + $0x30] sm:$0xff]
  %v78 = vld [vmem:[%s70 + $0x38] sm:$0xff]
  %v79 = vld [vmem:[%s70 + $0x40] sm:$0xff]
  %v80 = vld [vmem:[%s70 + $0x48] sm:$0xff]
  %v81 = vld [vmem:[%s70 + $0x50] sm:$0xff]
  %v82 = vld [vmem:[%s70 + $0x58] sm:$0xff]
  %v83 = vld [vmem:[%s70 + $0x60] sm:$0xff]
  %v84 = vld [vmem:[%s70 + $0x68] sm:$0xff]
  %v85 = vld [vmem:[%s70 + $0x70] sm:$0xff]
  %v86 = vld [vmem:[%s70 + $0x78] sm:$0xff]
  %v87 = vpack.c.bf16 %v72, %v71
  %v88 = vpack.c.bf16 %v74, %v73
  %v89 = vpack.c.bf16 %v76, %v75
  %v90 = vpack.c.bf16 %v78, %v77
  %v91 = vpack.c.bf16 %v80, %v79
  %v92 = vpack.c.bf16 %v82, %v81
  %v93 = vpack.c.bf16 %v84, %v83
  %v94 = vpack.c.bf16 %v86, %v85
  %s95 = scalar_lea.vmem %s1, 32
  %v96 = vld [vmem:[%s95] sm:$0xff]
  %v97 = vld [vmem:[%s95 + $0x8] sm:$0xff]
  %v98 = vld [vmem:[%s95 + $0x10] sm:$0xff]
  %v99 = vld [vmem:[%s95 + $0x18] sm:$0xff]
  %v104 = vunpack.c.l.b16 %v96
  %v105 = vunpack.c.h.b16 %v96
  %v106 = vunpack.c.l.b16 %v97
  %v107 = vunpack.c.h.b16 %v97
  %v108 = vunpack.c.l.b16 %v98
  %v109 = vunpack.c.h.b16 %v98
  %v110 = vunpack.c.l.b16 %v99
  %v111 = vunpack.c.h.b16 %v99
  %v112 = vpack.c.b16 %v106, %v104
  %v113 = vpack.c.b16 %v107, %v105
  %v114 = vpack.c.b16 %v110, %v108
  %v115 = vpack.c.b16 %v111, %v109
  %vm120 = vcmask 261120
  %v122 = vsel %vm120, %v87, 0
  %v125 = vsel %vm120, %v88, 0
  %v128 = vsel %vm120, %v89, 0
  %v131 = vsel %vm120, %v90, 0
  %v134 = vsel %vm120, %v91, 0
  %v137 = vsel %vm120, %v92, 0
  %v140 = vsel %vm120, %v93, 0
  %v143 = vsel %vm120, %v94, 0
  %145 = vmatprep.subr.bf16.mxu0 %v113
  %146 = vmatpush1.bf16.msra.mxu0 %v112
  %147 = vmatprep.subr.bf16.mxu0 %v115
  %148 = vmatpush1.bf16.msra.mxu0 %v114
  %149 = vmatprep.subr.bf16.mxu0 0
  %150 = vmatpush1.bf16.msra.mxu0 0
  %151 = vmatprep.subr.bf16.mxu0 0
  %152 = vmatpush1.bf16.msra.mxu0 0
  %153 = vmatprep.subr.bf16.mxu0 0
  %154 = vmatpush1.bf16.msra.mxu0 0
  %155 = vmatprep.subr.bf16.mxu0 0
  %156 = vmatpush1.bf16.msra.mxu0 0
  %157 = vmatprep.subr.bf16.mxu0 0
  %158 = vmatpush1.bf16.msra.mxu0 0
  %159 = vmatprep.subr.bf16.mxu0 0
  %160 = vmatpush1.bf16.msra.mxu0 0
  %161 = vmatprep.subr.bf16.mxu0 0
  %162 = vmatpush1.bf16.msra.mxu0 0
  %163 = vmatprep.subr.bf16.mxu0 0
  %164 = vmatpush1.bf16.msra.mxu0 0
  %165 = vmatprep.subr.bf16.mxu0 0
  %166 = vmatpush1.bf16.msra.mxu0 0
  %167 = vmatprep.subr.bf16.mxu0 0
  %168 = vmatpush1.bf16.msra.mxu0 0
  %169 = vmatprep.subr.bf16.mxu0 0
  %170 = vmatpush1.bf16.msra.mxu0 0
  %171 = vmatprep.subr.bf16.mxu0 0
  %172 = vmatpush1.bf16.msra.mxu0 0
  %173 = vmatprep.subr.bf16.mxu0 0
  %174 = vmatpush1.bf16.msra.mxu0 0
  %175 = vmatprep.subr.bf16.mxu0 0
  %176 = vmatpush1.bf16.msra.mxu0 0
  %177 = vmatprep.mubr.bf16.mxu0 0
  %178 = vmatmul.mubr.bf16.gmra.mrb[0].mxu0 %v122
  %v179 = vpop.f32.mrb[0].mxu0
  %v180 = vadd.f32 0.0, %v179
  %v181 = vpop.f32.mrb[0].mxu0
  %v182 = vadd.f32 0.0, %v181
  %v183 = vpop.f32.mrb[0].mxu0
  %v184 = vadd.f32 0.0, %v183
  %v185 = vpop.f32.mrb[0].mxu0
  %v186 = vadd.f32 0.0, %v185
  %187 = vmatprep.mubr.bf16.mxu0 0
  %188 = vmatmul.mubr.bf16.gmra.mrb[0].mxu0 %v125
  %v189 = vpop.f32.mrb[0].mxu0
  %v190 = vadd.f32 0.0, %v189
  %v191 = vpop.f32.mrb[0].mxu0
  %v192 = vadd.f32 0.0, %v191
  %v193 = vpop.f32.mrb[0].mxu0
  %v194 = vadd.f32 0.0, %v193
  %v195 = vpop.f32.mrb[0].mxu0
  %v196 = vadd.f32 0.0, %v195
  %197 = vmatprep.mubr.bf16.mxu0 0
  %198 = vmatmul.mubr.bf16.gmra.mrb[0].mxu0 %v128
  %v199 = vpop.f32.mrb[0].mxu0
  %v200 = vadd.f32 0.0, %v199
  %v201 = vpop.f32.mrb[0].mxu0
  %v202 = vadd.f32 0.0, %v201
  %v203 = vpop.f32.mrb[0].mxu0
  %v204 = vadd.f32 0.0, %v203
  %v205 = vpop.f32.mrb[0].mxu0
  %v206 = vadd.f32 0.0, %v205
  %207 = vmatprep.mubr.bf16.mxu0 0
  %208 = vmatmul.mubr.bf16.gmra.mrb[0].mxu0 %v131
  %v209 = vpop.f32.mrb[0].mxu0
  %v210 = vadd.f32 0.0, %v209
  %v211 = vpop.f32.mrb[0].mxu0
  %v212 = vadd.f32 0.0, %v211
  %v213 = vpop.f32.mrb[0].mxu0
  %v214 = vadd.f32 0.0, %v213
  %v215 = vpop.f32.mrb[0].mxu0
  %v216 = vadd.f32 0.0, %v215
  %217 = vmatprep.mubr.bf16.mxu0 0
  %218 = vmatmul.mubr.bf16.gmra.mrb[0].mxu0 %v134
  %v219 = vpop.f32.mrb[0].mxu0
  %v220 = vadd.f32 0.0, %v219
  %v221 = vpop.f32.mrb[0].mxu0
  %v222 = vadd.f32 0.0, %v221
  %v223 = vpop.f32.mrb[0].mxu0
  %v224 = vadd.f32 0.0, %v223
  %v225 = vpop.f32.mrb[0].mxu0
  %v226 = vadd.f32 0.0, %v225
  %227 = vmatprep.mubr.bf16.mxu0 0
  %228 = vmatmul.mubr.bf16.gmra.mrb[0].mxu0 %v137
  %v229 = vpop.f32.mrb[0].mxu0
  %v230 = vadd.f32 0.0, %v229
  %v231 = vpop.f32.mrb[0].mxu0
  %v232 = vadd.f32 0.0, %v231
  %v233 = vpop.f32.mrb[0].mxu0
  %v234 = vadd.f32 0.0, %v233
  %v235 = vpop.f32.mrb[0].mxu0
  %v236 = vadd.f32 0.0, %v235
  %237 = vmatprep.mubr.bf16.mxu0 0
  %238 = vmatmul.mubr.bf16.gmra.mrb[0].mxu0 %v140
  %v239 = vpop.f32.mrb[0].mxu0
  %v240 = vadd.f32 0.0, %v239
  %v241 = vpop.f32.mrb[0].mxu0
  %v242 = vadd.f32 0.0, %v241
  %v243 = vpop.f32.mrb[0].mxu0
  %v244 = vadd.f32 0.0, %v243
  %v245 = vpop.f32.mrb[0].mxu0
  %v246 = vadd.f32 0.0, %v245
  %247 = vmatprep.mubr.bf16.mxu0 0
  %248 = vmatmul.mubr.bf16.gmra.mrb[0].mxu0 %v143
  %v249 = vpop.f32.mrb[0].mxu0
  %v250 = vadd.f32 0.0, %v249
  %v251 = vpop.f32.mrb[0].mxu0
  %v252 = vadd.f32 0.0, %v251
  %v253 = vpop.f32.mrb[0].mxu0
  %v254 = vadd.f32 0.0, %v253
  %v255 = vpop.f32.mrb[0].mxu0
  %v256 = vadd.f32 0.0, %v255
  %257 = vdwg.mxu0
  %v262 = vunpack.c.l.b16 %v66
  %v263 = vunpack.c.h.b16 %v66
  %v264 = vunpack.c.l.b16 %v67
  %v265 = vunpack.c.h.b16 %v67
  %v266 = vunpack.c.l.b16 %v68
  %v267 = vunpack.c.h.b16 %v68
  %v268 = vunpack.c.l.b16 %v69
  %v269 = vunpack.c.h.b16 %v69
  %v270 = vpack.c.b16 %v264, %v262
  %v271 = vpack.c.b16 %v265, %v263
  %v272 = vpack.c.b16 %v268, %v266
  %v273 = vpack.c.b16 %v269, %v267
  %v279 = vsel %vm120, %v58, 0
  %v282 = vsel %vm120, %v59, 0
  %v285 = vsel %vm120, %v60, 0
  %v288 = vsel %vm120, %v61, 0
  %v291 = vsel %vm120, %v62, 0
  %v294 = vsel %vm120, %v63, 0
  %v297 = vsel %vm120, %v64, 0
  %v300 = vsel %vm120, %v65, 0
  %302 = vmatprep.subr.bf16.mxu0 %v271
  %303 = vmatpush1.bf16.msra.mxu0 %v270
  %304 = vmatprep.subr.bf16.mxu0 %v273
  %305 = vmatpush1.bf16.msra.mxu0 %v272
  %306 = vmatprep.subr.bf16.mxu0 0
  %307 = vmatpush1.bf16.msra.mxu0 0
  %308 = vmatprep.subr.bf16.mxu0 0
  %309 = vmatpush1.bf16.msra.mxu0 0
  %310 = vmatprep.subr.bf16.mxu0 0
  %311 = vmatpush1.bf16.msra.mxu0 0
  %312 = vmatprep.subr.bf16.mxu0 0
  %313 = vmatpush1.bf16.msra.mxu0 0
  %314 = vmatprep.subr.bf16.mxu0 0
  %315 = vmatpush1.bf16.msra.mxu0 0
  %316 = vmatprep.subr.bf16.mxu0 0
  %317 = vmatpush1.bf16.msra.mxu0 0
  %318 = vmatprep.subr.bf16.mxu0 0
  %319 = vmatpush1.bf16.msra.mxu0 0
  %320 = vmatprep.subr.bf16.mxu0 0
  %321 = vmatpush1.bf16.msra.mxu0 0
  %322 = vmatprep.subr.bf16.mxu0 0
  %323 = vmatpush1.bf16.msra.mxu0 0
  %324 = vmatprep.subr.bf16.mxu0 0
  %325 = vmatpush1.bf16.msra.mxu0 0
  %326 = vmatprep.subr.bf16.mxu0 0
  %327 = vmatpush1.bf16.msra.mxu0 0
  %328 = vmatprep.subr.bf16.mxu0 0
  %329 = vmatpush1.bf16.msra.mxu0 0
  %330 = vmatprep.subr.bf16.mxu0 0
  %331 = vmatpush1.bf16.msra.mxu0 0
  %332 = vmatprep.subr.bf16.mxu0 0
  %333 = vmatpush1.bf16.msra.mxu0 0
  %334 = vmatprep.mubr.bf16.mxu0 0
  %335 = vmatmul.mubr.bf16.gmra.mrb[0].mxu0 %v279
  %v336 = vpop.f32.mrb[0].mxu0
  %v337 = vadd.f32 %v180, %v336
  %v338 = vpop.f32.mrb[0].mxu0
  %v339 = vadd.f32 %v182, %v338
  %v340 = vpop.f32.mrb[0].mxu0
  %v341 = vadd.f32 %v184, %v340
  %v342 = vpop.f32.mrb[0].mxu0
  %v343 = vadd.f32 %v186, %v342
  %344 = vmatprep.mubr.bf16.mxu0 0
  %345 = vmatmul.mubr.bf16.gmra.mrb[0].mxu0 %v282
  %v346 = vpop.f32.mrb[0].mxu0
  %v347 = vadd.f32 %v190, %v346
  %v348 = vpop.f32.mrb[0].mxu0
  %v349 = vadd.f32 %v192, %v348
  %v350 = vpop.f32.mrb[0].mxu0
  %v351 = vadd.f32 %v194, %v350
  %v352 = vpop.f32.mrb[0].mxu0
  %v353 = vadd.f32 %v196, %v352
  %354 = vmatprep.mubr.bf16.mxu0 0
  %355 = vmatmul.mubr.bf16.gmra.mrb[0].mxu0 %v285
  %v356 = vpop.f32.mrb[0].mxu0
  %v357 = vadd.f32 %v200, %v356
  %v358 = vpop.f32.mrb[0].mxu0
  %v359 = vadd.f32 %v202, %v358
  %v360 = vpop.f32.mrb[0].mxu0
  %v361 = vadd.f32 %v204, %v360
  %v362 = vpop.f32.mrb[0].mxu0
  %v363 = vadd.f32 %v206, %v362
  %364 = vmatprep.mubr.bf16.mxu0 0
  %365 = vmatmul.mubr.bf16.gmra.mrb[0].mxu0 %v288
  %v366 = vpop.f32.mrb[0].mxu0
  %v367 = vadd.f32 %v210, %v366
  %v368 = vpop.f32.mrb[0].mxu0
  %v369 = vadd.f32 %v212, %v368
  %v370 = vpop.f32.mrb[0].mxu0
  %v371 = vadd.f32 %v214, %v370
  %v372 = vpop.f32.mrb[0].mxu0
  %v373 = vadd.f32 %v216, %v372
  %374 = vmatprep.mubr.bf16.mxu0 0
  %375 = vmatmul.mubr.bf16.gmra.mrb[0].mxu0 %v291
  %v376 = vpop.f32.mrb[0].mxu0
  %v377 = vadd.f32 %v220, %v376
  %v378 = vpop.f32.mrb[0].mxu0
  %v379 = vadd.f32 %v222, %v378
  %v380 = vpop.f32.mrb[0].mxu0
  %v381 = vadd.f32 %v224, %v380
  %v382 = vpop.f32.mrb[0].mxu0
  %v383 = vadd.f32 %v226, %v382
  %384 = vmatprep.mubr.bf16.mxu0 0
  %385 = vmatmul.mubr.bf16.gmra.mrb[0].mxu0 %v294
  %v386 = vpop.f32.mrb[0].mxu0
  %v387 = vadd.f32 %v230, %v386
  %v388 = vpop.f32.mrb[0].mxu0
  %v389 = vadd.f32 %v232, %v388
  %v390 = vpop.f32.mrb[0].mxu0
  %v391 = vadd.f32 %v234, %v390
  %v392 = vpop.f32.mrb[0].mxu0
  %v393 = vadd.f32 %v236, %v392
  %394 = vmatprep.mubr.bf16.mxu0 0
  %395 = vmatmul.mubr.bf16.gmra.mrb[0].mxu0 %v297
  %v396 = vpop.f32.mrb[0].mxu0
  %v397 = vadd.f32 %v240, %v396
  %v398 = vpop.f32.mrb[0].mxu0
  %v399 = vadd.f32 %v242, %v398
  %v400 = vpop.f32.mrb[0].mxu0
  %v401 = vadd.f32 %v244, %v400
  %v402 = vpop.f32.mrb[0].mxu0
  %v403 = vadd.f32 %v246, %v402
  %404 = vmatprep.mubr.bf16.mxu0 0
  %405 = vmatmul.mubr.bf16.gmra.mrb[0].mxu0 %v300
  %v406 = vpop.f32.mrb[0].mxu0
  %v407 = vadd.f32 %v250, %v406
  %v408 = vpop.f32.mrb[0].mxu0
  %v409 = vadd.f32 %v252, %v408
  %v410 = vpop.f32.mrb[0].mxu0
  %v411 = vadd.f32 %v254, %v410
  %v412 = vpop.f32.mrb[0].mxu0
  %v413 = vadd.f32 %v256, %v412
  %414 = vdwg.mxu0
  %s415 = scalar_lea.vmem %s0, 256
  %v416 = vld [vmem:[%s415] sm:$0xff]
  %v417 = vld [vmem:[%s415 + $0x8] sm:$0xff]
  %v418 = vld [vmem:[%s415 + $0x10] sm:$0xff]
  %v419 = vld [vmem:[%s415 + $0x18] sm:$0xff]
  %v420 = vld [vmem:[%s415 + $0x20] sm:$0xff]
  %v421 = vld [vmem:[%s415 + $0x28] sm:$0xff]
  %v422 = vld [vmem:[%s415 + $0x30] sm:$0xff]
  %v423 = vld [vmem:[%s415 + $0x38] sm:$0xff]
  %v424 = vld [vmem:[%s415 + $0x40] sm:$0xff]
  %v425 = vld [vmem:[%s415 + $0x48] sm:$0xff]
  %v426 = vld [vmem:[%s415 + $0x50] sm:$0xff]
  %v427 = vld [vmem:[%s415 + $0x58] sm:$0xff]
  %v428 = vld [vmem:[%s415 + $0x60] sm:$0xff]
  %v429 = vld [vmem:[%s415 + $0x68] sm:$0xff]
  %v430 = vld [vmem:[%s415 + $0x70] sm:$0xff]
  %v431 = vld [vmem:[%s415 + $0x78] sm:$0xff]
  %v432 = vpack.c.bf16 %v417, %v416
  %v433 = vpack.c.bf16 %v419, %v418
  %v434 = vpack.c.bf16 %v421, %v420
  %v435 = vpack.c.bf16 %v423, %v422
  %v436 = vpack.c.bf16 %v425, %v424
  %v437 = vpack.c.bf16 %v427, %v426
  %v438 = vpack.c.bf16 %v429, %v428
  %v439 = vpack.c.bf16 %v431, %v430
  %s440 = scalar_lea.vmem %s1, 64
  %v441 = vld [vmem:[%s440] sm:$0xff]
  %v442 = vld [vmem:[%s440 + $0x8] sm:$0xff]
  %v443 = vld [vmem:[%s440 + $0x10] sm:$0xff]
  %v444 = vld [vmem:[%s440 + $0x18] sm:$0xff]
  %v449 = vunpack.c.l.b16 %v441
  %v450 = vunpack.c.h.b16 %v441
  %v451 = vunpack.c.l.b16 %v442
  %v452 = vunpack.c.h.b16 %v442
  %v453 = vunpack.c.l.b16 %v443
  %v454 = vunpack.c.h.b16 %v443
  %v455 = vunpack.c.l.b16 %v444
  %v456 = vunpack.c.h.b16 %v444
  %v457 = vpack.c.b16 %v451, %v449
  %v458 = vpack.c.b16 %v452, %v450
  %v459 = vpack.c.b16 %v455, %v453
  %v460 = vpack.c.b16 %v456, %v454
  %v466 = vsel %vm120, %v432, 0
  %v469 = vsel %vm120, %v433, 0
  %v472 = vsel %vm120, %v434, 0
  %v475 = vsel %vm120, %v435, 0
  %v478 = vsel %vm120, %v436, 0
  %v481 = vsel %vm120, %v437, 0
  %v484 = vsel %vm120, %v438, 0
  %v487 = vsel %vm120, %v439, 0
  %489 = vmatprep.subr.bf16.mxu0 %v458
  %490 = vmatpush1.bf16.msra.mxu0 %v457
  %491 = vmatprep.subr.bf16.mxu0 %v460
  %492 = vmatpush1.bf16.msra.mxu0 %v459
  %493 = vmatprep.subr.bf16.mxu0 0
  %494 = vmatpush1.bf16.msra.mxu0 0
  %495 = vmatprep.subr.bf16.mxu0 0
  %496 = vmatpush1.bf16.msra.mxu0 0
  %497 = vmatprep.subr.bf16.mxu0 0
  %498 = vmatpush1.bf16.msra.mxu0 0
  %499 = vmatprep.subr.bf16.mxu0 0
  %500 = vmatpush1.bf16.msra.mxu0 0
  %501 = vmatprep.subr.bf16.mxu0 0
  %502 = vmatpush1.bf16.msra.mxu0 0
  %503 = vmatprep.subr.bf16.mxu0 0
  %504 = vmatpush1.bf16.msra.mxu0 0
  %505 = vmatprep.subr.bf16.mxu0 0
  %506 = vmatpush1.bf16.msra.mxu0 0
  %507 = vmatprep.subr.bf16.mxu0 0
  %508 = vmatpush1.bf16.msra.mxu0 0
  %509 = vmatprep.subr.bf16.mxu0 0
  %510 = vmatpush1.bf16.msra.mxu0 0
  %511 = vmatprep.subr.bf16.mxu0 0
  %512 = vmatpush1.bf16.msra.mxu0 0
  %513 = vmatprep.subr.bf16.mxu0 0
  %514 = vmatpush1.bf16.msra.mxu0 0
  %515 = vmatprep.subr.bf16.mxu0 0
  %516 = vmatpush1.bf16.msra.mxu0 0
  %517 = vmatprep.subr.bf16.mxu0 0
  %518 = vmatpush1.bf16.msra.mxu0 0
  %519 = vmatprep.subr.bf16.mxu0 0
  %520 = vmatpush1.bf16.msra.mxu0 0
  %521 = vmatprep.mubr.bf16.mxu0 0
  %522 = vmatmul.mubr.bf16.gmra.mrb[0].mxu0 %v466
  %v523 = vpop.f32.mrb[0].mxu0
  %v524 = vadd.f32 0.0, %v523
  %v525 = vpop.f32.mrb[0].mxu0
  %v526 = vadd.f32 0.0, %v525
  %v527 = vpop.f32.mrb[0].mxu0
  %v528 = vadd.f32 0.0, %v527
  %v529 = vpop.f32.mrb[0].mxu0
  %v530 = vadd.f32 0.0, %v529
  %531 = vmatprep.mubr.bf16.mxu0 0
  %532 = vmatmul.mubr.bf16.gmra.mrb[0].mxu0 %v469
  %v533 = vpop.f32.mrb[0].mxu0
  %v534 = vadd.f32 0.0, %v533
  %v535 = vpop.f32.mrb[0].mxu0
  %v536 = vadd.f32 0.0, %v535
  %v537 = vpop.f32.mrb[0].mxu0
  %v538 = vadd.f32 0.0, %v537
  %v539 = vpop.f32.mrb[0].mxu0
  %v540 = vadd.f32 0.0, %v539
  %541 = vmatprep.mubr.bf16.mxu0 0
  %542 = vmatmul.mubr.bf16.gmra.mrb[0].mxu0 %v472
  %v543 = vpop.f32.mrb[0].mxu0
  %v544 = vadd.f32 0.0, %v543
  %v545 = vpop.f32.mrb[0].mxu0
  %v546 = vadd.f32 0.0, %v545
  %v547 = vpop.f32.mrb[0].mxu0
  %v548 = vadd.f32 0.0, %v547
  %v549 = vpop.f32.mrb[0].mxu0
  %v550 = vadd.f32 0.0, %v549
  %551 = vmatprep.mubr.bf16.mxu0 0
  %552 = vmatmul.mubr.bf16.gmra.mrb[0].mxu0 %v475
  %v553 = vpop.f32.mrb[0].mxu0
  %v554 = vadd.f32 0.0, %v553
  %v555 = vpop.f32.mrb[0].mxu0
  %v556 = vadd.f32 0.0, %v555
  %v557 = vpop.f32.mrb[0].mxu0
  %v558 = vadd.f32 0.0, %v557
  %v559 = vpop.f32.mrb[0].mxu0
  %v560 = vadd.f32 0.0, %v559
  %561 = vmatprep.mubr.bf16.mxu0 0
  %562 = vmatmul.mubr.bf16.gmra.mrb[0].mxu0 %v478
  %v563 = vpop.f32.mrb[0].mxu0
  %v564 = vadd.f32 0.0, %v563
  %v565 = vpop.f32.mrb[0].mxu0
  %v566 = vadd.f32 0.0, %v565
  %v567 = vpop.f32.mrb[0].mxu0
  %v568 = vadd.f32 0.0, %v567
  %v569 = vpop.f32.mrb[0].mxu0
  %v570 = vadd.f32 0.0, %v569
  %571 = vmatprep.mubr.bf16.mxu0 0
  %572 = vmatmul.mubr.bf16.gmra.mrb[0].mxu0 %v481
  %v573 = vpop.f32.mrb[0].mxu0
  %v574 = vadd.f32 0.0, %v573
  %v575 = vpop.f32.mrb[0].mxu0
  %v576 = vadd.f32 0.0, %v575
  %v577 = vpop.f32.mrb[0].mxu0
  %v578 = vadd.f32 0.0, %v577
  %v579 = vpop.f32.mrb[0].mxu0
  %v580 = vadd.f32 0.0, %v579
  %581 = vmatprep.mubr.bf16.mxu0 0
  %582 = vmatmul.mubr.bf16.gmra.mrb[0].mxu0 %v484
  %v583 = vpop.f32.mrb[0].mxu0
  %v584 = vadd.f32 0.0, %v583
  %v585 = vpop.f32.mrb[0].mxu0
  %v586 = vadd.f32 0.0, %v585
  %v587 = vpop.f32.mrb[0].mxu0
  %v588 = vadd.f32 0.0, %v587
  %v589 = vpop.f32.mrb[0].mxu0
  %v590 = vadd.f32 0.0, %v589
  %591 = vmatprep.mubr.bf16.mxu0 0
  %592 = vmatmul.mubr.bf16.gmra.mrb[0].mxu0 %v487
  %v593 = vpop.f32.mrb[0].mxu0
  %v594 = vadd.f32 0.0, %v593
  %v595 = vpop.f32.mrb[0].mxu0
  %v596 = vadd.f32 0.0, %v595
  %v597 = vpop.f32.mrb[0].mxu0
  %v598 = vadd.f32 0.0, %v597
  %v599 = vpop.f32.mrb[0].mxu0
  %v600 = vadd.f32 0.0, %v599
  %601 = vdwg.mxu0
  %v602 = vadd.f32 %v337, %v524
  %v603 = vadd.f32 %v339, %v526
  %v604 = vadd.f32 %v341, %v528
  %v605 = vadd.f32 %v343, %v530
  %v606 = vadd.f32 %v347, %v534
  %v607 = vadd.f32 %v349, %v536
  %v608 = vadd.f32 %v351, %v538
  %v609 = vadd.f32 %v353, %v540
  %v610 = vadd.f32 %v357, %v544
  %v611 = vadd.f32 %v359, %v546
  %v612 = vadd.f32 %v361, %v548
  %v613 = vadd.f32 %v363, %v550
  %v614 = vadd.f32 %v367, %v554
  %v615 = vadd.f32 %v369, %v556
  %v616 = vadd.f32 %v371, %v558
  %v617 = vadd.f32 %v373, %v560
  %v618 = vadd.f32 %v377, %v564
  %v619 = vadd.f32 %v379, %v566
  %v620 = vadd.f32 %v381, %v568
  %v621 = vadd.f32 %v383, %v570
  %v622 = vadd.f32 %v387, %v574
  %v623 = vadd.f32 %v389, %v576
  %v624 = vadd.f32 %v391, %v578
  %v625 = vadd.f32 %v393, %v580
  %v626 = vadd.f32 %v397, %v584
  %v627 = vadd.f32 %v399, %v586
  %v628 = vadd.f32 %v401, %v588
  %v629 = vadd.f32 %v403, %v590
  %v630 = vadd.f32 %v407, %v594
  %v631 = vadd.f32 %v409, %v596
  %v632 = vadd.f32 %v411, %v598
  %v633 = vadd.f32 %v413, %v600
  %v634 = vld [vmem:[%s2] sm:$0x3]
  %v636 = vlaneseq
  %v637 = vshrl.u32 %v636, 7
  %v638 = vsub.s32 0, %v637
  %v639 = vrot.slane %v634, %v638
  %v640 = vlaneseq
  %v641 = vshrl.u32 %v640, 7
  %v642 = vsub.s32 1, %v641
  %v643 = vrot.slane %v634, %v642
  %v646 = vadd.f32 %v602, %v639
  %v647 = vadd.f32 %v603, %v643
  %v648 = vadd.f32 %v604, %v639
  %v649 = vadd.f32 %v605, %v643
  %v650 = vadd.f32 %v606, %v639
  %v651 = vadd.f32 %v607, %v643
  %v652 = vadd.f32 %v608, %v639
  %v653 = vadd.f32 %v609, %v643
  %v654 = vadd.f32 %v610, %v639
  %v655 = vadd.f32 %v611, %v643
  %v656 = vadd.f32 %v612, %v639
  %v657 = vadd.f32 %v613, %v643
  %v658 = vadd.f32 %v614, %v639
  %v659 = vadd.f32 %v615, %v643
  %v660 = vadd.f32 %v616, %v639
  %v661 = vadd.f32 %v617, %v643
  %v662 = vadd.f32 %v618, %v639
  %v663 = vadd.f32 %v619, %v643
  %v664 = vadd.f32 %v620, %v639
  %v665 = vadd.f32 %v621, %v643
  %v666 = vadd.f32 %v622, %v639
  %v667 = vadd.f32 %v623, %v643
  %v668 = vadd.f32 %v624, %v639
  %v669 = vadd.f32 %v625, %v643
  %v670 = vadd.f32 %v626, %v639
  %v671 = vadd.f32 %v627, %v643
  %v672 = vadd.f32 %v628, %v639
  %v673 = vadd.f32 %v629, %v643
  %v674 = vadd.f32 %v630, %v639
  %v675 = vadd.f32 %v631, %v643
  %v676 = vadd.f32 %v632, %v639
  %v677 = vadd.f32 %v633, %v643
  %v678 = vmax.f32 %v646, 0.0
  %v679 = vmax.f32 %v647, 0.0
  %v680 = vmax.f32 %v648, 0.0
  %v681 = vmax.f32 %v649, 0.0
  %v682 = vmax.f32 %v650, 0.0
  %v683 = vmax.f32 %v651, 0.0
  %v684 = vmax.f32 %v652, 0.0
  %v685 = vmax.f32 %v653, 0.0
  %v686 = vmax.f32 %v654, 0.0
  %v687 = vmax.f32 %v655, 0.0
  %v688 = vmax.f32 %v656, 0.0
  %v689 = vmax.f32 %v657, 0.0
  %v690 = vmax.f32 %v658, 0.0
  %v691 = vmax.f32 %v659, 0.0
  %v692 = vmax.f32 %v660, 0.0
  %v693 = vmax.f32 %v661, 0.0
  %v694 = vmax.f32 %v662, 0.0
  %v695 = vmax.f32 %v663, 0.0
  %v696 = vmax.f32 %v664, 0.0
  %v697 = vmax.f32 %v665, 0.0
  %v698 = vmax.f32 %v666, 0.0
  %v699 = vmax.f32 %v667, 0.0
  %v700 = vmax.f32 %v668, 0.0
  %v701 = vmax.f32 %v669, 0.0
  %v702 = vmax.f32 %v670, 0.0
  %v703 = vmax.f32 %v671, 0.0
  %v704 = vmax.f32 %v672, 0.0
  %v705 = vmax.f32 %v673, 0.0
  %v706 = vmax.f32 %v674, 0.0
  %v707 = vmax.f32 %v675, 0.0
  %v708 = vmax.f32 %v676, 0.0
  %v709 = vmax.f32 %v677, 0.0
  %v710 = vpack.c.bf16 %v680, %v678
  %v711 = vpack.c.bf16 %v681, %v679
  %v712 = vpack.c.bf16 %v684, %v682
  %v713 = vpack.c.bf16 %v685, %v683
  %v714 = vpack.c.bf16 %v688, %v686
  %v715 = vpack.c.bf16 %v689, %v687
  %v716 = vpack.c.bf16 %v692, %v690
  %v717 = vpack.c.bf16 %v693, %v691
  %v718 = vpack.c.bf16 %v696, %v694
  %v719 = vpack.c.bf16 %v697, %v695
  %v720 = vpack.c.bf16 %v700, %v698
  %v721 = vpack.c.bf16 %v701, %v699
  %v722 = vpack.c.bf16 %v704, %v702
  %v723 = vpack.c.bf16 %v705, %v703
  %v724 = vpack.c.bf16 %v708, %v706
  %v725 = vpack.c.bf16 %v709, %v707
  %v726 = vld [vmem:[%s3] sm:$0xff]
  %v727 = vld [vmem:[%s3 + $0x8] sm:$0xff]
  %v728 = vld [vmem:[%s3 + $0x10] sm:$0xff]
  %v729 = vld [vmem:[%s3 + $0x18] sm:$0xff]
  %v730 = vld [vmem:[%s3 + $0x20] sm:$0xff]
  %v731 = vld [vmem:[%s3 + $0x28] sm:$0xff]
  %v732 = vld [vmem:[%s3 + $0x30] sm:$0xff]
  %v733 = vld [vmem:[%s3 + $0x38] sm:$0xff]
  %v734 = vld [vmem:[%s3 + $0x40] sm:$0xff]
  %v735 = vld [vmem:[%s3 + $0x48] sm:$0xff]
  %v736 = vld [vmem:[%s3 + $0x50] sm:$0xff]
  %v737 = vld [vmem:[%s3 + $0x58] sm:$0xff]
  %v738 = vld [vmem:[%s3 + $0x60] sm:$0xff]
  %v739 = vld [vmem:[%s3 + $0x68] sm:$0xff]
  %v740 = vld [vmem:[%s3 + $0x70] sm:$0xff]
  %v741 = vld [vmem:[%s3 + $0x78] sm:$0xff]
  %v742 = vld [vmem:[%s3 + $0x80] sm:$0xff]
  %v743 = vld [vmem:[%s3 + $0x88] sm:$0xff]
  %v744 = vld [vmem:[%s3 + $0x90] sm:$0xff]
  %v745 = vld [vmem:[%s3 + $0x98] sm:$0xff]
  %v746 = vld [vmem:[%s3 + $0xa0] sm:$0xff]
  %v747 = vld [vmem:[%s3 + $0xa8] sm:$0xff]
  %v748 = vld [vmem:[%s3 + $0xb0] sm:$0xff]
  %v749 = vld [vmem:[%s3 + $0xb8] sm:$0xff]
  %v750 = vld [vmem:[%s3 + $0xc0] sm:$0xff]
  %v751 = vld [vmem:[%s3 + $0xc8] sm:$0xff]
  %v752 = vld [vmem:[%s3 + $0xd0] sm:$0xff]
  %v753 = vld [vmem:[%s3 + $0xd8] sm:$0xff]
  %v754 = vld [vmem:[%s3 + $0xe0] sm:$0xff]
  %v755 = vld [vmem:[%s3 + $0xe8] sm:$0xff]
  %v756 = vld [vmem:[%s3 + $0xf0] sm:$0xff]
  %v757 = vld [vmem:[%s3 + $0xf8] sm:$0xff]
  %v758 = vld [vmem:[%s4] sm:$0x3]
  %v760 = vlaneseq
  %v761 = vshrl.u32 %v760, 7
  %v762 = vsub.s32 0, %v761
  %v763 = vrot.slane %v758, %v762
  %v764 = vlaneseq
  %v765 = vshrl.u32 %v764, 7
  %v766 = vsub.s32 1, %v765
  %v767 = vrot.slane %v758, %v766
  %v802 = vunpack.c.l.b16 %v726
  %v803 = vunpack.c.h.b16 %v726
  %v804 = vunpack.c.l.b16 %v727
  %v805 = vunpack.c.h.b16 %v727
  %v806 = vunpack.c.l.b16 %v728
  %v807 = vunpack.c.h.b16 %v728
  %v808 = vunpack.c.l.b16 %v729
  %v809 = vunpack.c.h.b16 %v729
  %v810 = vunpack.c.l.b16 %v730
  %v811 = vunpack.c.h.b16 %v730
  %v812 = vunpack.c.l.b16 %v731
  %v813 = vunpack.c.h.b16 %v731
  %v814 = vunpack.c.l.b16 %v732
  %v815 = vunpack.c.h.b16 %v732
  %v816 = vunpack.c.l.b16 %v733
  %v817 = vunpack.c.h.b16 %v733
  %v818 = vunpack.c.l.b16 %v734
  %v819 = vunpack.c.h.b16 %v734
  %v820 = vunpack.c.l.b16 %v735
  %v821 = vunpack.c.h.b16 %v735
  %v822 = vunpack.c.l.b16 %v736
  %v823 = vunpack.c.h.b16 %v736
  %v824 = vunpack.c.l.b16 %v737
  %v825 = vunpack.c.h.b16 %v737
  %v826 = vunpack.c.l.b16 %v738
  %v827 = vunpack.c.h.b16 %v738
  %v828 = vunpack.c.l.b16 %v739
  %v829 = vunpack.c.h.b16 %v739
  %v830 = vunpack.c.l.b16 %v740
  %v831 = vunpack.c.h.b16 %v740
  %v832 = vunpack.c.l.b16 %v741
  %v833 = vunpack.c.h.b16 %v741
  %v834 = vunpack.c.l.b16 %v742
  %v835 = vunpack.c.h.b16 %v742
  %v836 = vunpack.c.l.b16 %v743
  %v837 = vunpack.c.h.b16 %v743
  %v838 = vunpack.c.l.b16 %v744
  %v839 = vunpack.c.h.b16 %v744
  %v840 = vunpack.c.l.b16 %v745
  %v841 = vunpack.c.h.b16 %v745
  %v842 = vunpack.c.l.b16 %v746
  %v843 = vunpack.c.h.b16 %v746
  %v844 = vunpack.c.l.b16 %v747
  %v845 = vunpack.c.h.b16 %v747
  %v846 = vunpack.c.l.b16 %v748
  %v847 = vunpack.c.h.b16 %v748
  %v848 = vunpack.c.l.b16 %v749
  %v849 = vunpack.c.h.b16 %v749
  %v850 = vunpack.c.l.b16 %v750
  %v851 = vunpack.c.h.b16 %v750
  %v852 = vunpack.c.l.b16 %v751
  %v853 = vunpack.c.h.b16 %v751
  %v854 = vunpack.c.l.b16 %v752
  %v855 = vunpack.c.h.b16 %v752
  %v856 = vunpack.c.l.b16 %v753
  %v857 = vunpack.c.h.b16 %v753
  %v858 = vunpack.c.l.b16 %v754
  %v859 = vunpack.c.h.b16 %v754
  %v860 = vunpack.c.l.b16 %v755
  %v861 = vunpack.c.h.b16 %v755
  %v862 = vunpack.c.l.b16 %v756
  %v863 = vunpack.c.h.b16 %v756
  %v864 = vunpack.c.l.b16 %v757
  %v865 = vunpack.c.h.b16 %v757
  %v866 = vpack.c.b16 %v804, %v802
  %v867 = vpack.c.b16 %v805, %v803
  %v868 = vpack.c.b16 %v808, %v806
  %v869 = vpack.c.b16 %v809, %v807
  %v870 = vpack.c.b16 %v812, %v810
  %v871 = vpack.c.b16 %v813, %v811
  %v872 = vpack.c.b16 %v816, %v814
  %v873 = vpack.c.b16 %v817, %v815
  %v874 = vpack.c.b16 %v820, %v818
  %v875 = vpack.c.b16 %v821, %v819
  %v876 = vpack.c.b16 %v824, %v822
  %v877 = vpack.c.b16 %v825, %v823
  %v878 = vpack.c.b16 %v828, %v826
  %v879 = vpack.c.b16 %v829, %v827
  %v880 = vpack.c.b16 %v832, %v830
  %v881 = vpack.c.b16 %v833, %v831
  %v882 = vpack.c.b16 %v836, %v834
  %v883 = vpack.c.b16 %v837, %v835
  %v884 = vpack.c.b16 %v840, %v838
  %v885 = vpack.c.b16 %v841, %v839
  %v886 = vpack.c.b16 %v844, %v842
  %v887 = vpack.c.b16 %v845, %v843
  %v888 = vpack.c.b16 %v848, %v846
  %v889 = vpack.c.b16 %v849, %v847
  %v890 = vpack.c.b16 %v852, %v850
  %v891 = vpack.c.b16 %v853, %v851
  %v892 = vpack.c.b16 %v856, %v854
  %v893 = vpack.c.b16 %v857, %v855
  %v894 = vpack.c.b16 %v860, %v858
  %v895 = vpack.c.b16 %v861, %v859
  %v896 = vpack.c.b16 %v864, %v862
  %v897 = vpack.c.b16 %v865, %v863
  %930 = vmatprep.subr.bf16.mxu0 %v867
  %931 = vmatpush1.bf16.msra.mxu0 %v866
  %932 = vmatprep.subr.bf16.mxu0 %v869
  %933 = vmatpush1.bf16.msra.mxu0 %v868
  %934 = vmatprep.subr.bf16.mxu0 %v871
  %935 = vmatpush1.bf16.msra.mxu0 %v870
  %936 = vmatprep.subr.bf16.mxu0 %v873
  %937 = vmatpush1.bf16.msra.mxu0 %v872
  %938 = vmatprep.subr.bf16.mxu0 %v875
  %939 = vmatpush1.bf16.msra.mxu0 %v874
  %940 = vmatprep.subr.bf16.mxu0 %v877
  %941 = vmatpush1.bf16.msra.mxu0 %v876
  %942 = vmatprep.subr.bf16.mxu0 %v879
  %943 = vmatpush1.bf16.msra.mxu0 %v878
  %944 = vmatprep.subr.bf16.mxu0 %v881
  %945 = vmatpush1.bf16.msra.mxu0 %v880
  %946 = vmatprep.subr.bf16.mxu0 %v883
  %947 = vmatpush1.bf16.msra.mxu0 %v882
  %948 = vmatprep.subr.bf16.mxu0 %v885
  %949 = vmatpush1.bf16.msra.mxu0 %v884
  %950 = vmatprep.subr.bf16.mxu0 %v887
  %951 = vmatpush1.bf16.msra.mxu0 %v886
  %952 = vmatprep.subr.bf16.mxu0 %v889
  %953 = vmatpush1.bf16.msra.mxu0 %v888
  %954 = vmatprep.subr.bf16.mxu0 %v891
  %955 = vmatpush1.bf16.msra.mxu0 %v890
  %956 = vmatprep.subr.bf16.mxu0 %v893
  %957 = vmatpush1.bf16.msra.mxu0 %v892
  %958 = vmatprep.subr.bf16.mxu0 %v895
  %959 = vmatpush1.bf16.msra.mxu0 %v894
  %960 = vmatprep.subr.bf16.mxu0 %v897
  %961 = vmatpush1.bf16.msra.mxu0 %v896
  %962 = vmatprep.mubr.bf16.mxu0 %v711
  %963 = vmatmul.mubr.bf16.gmra.mrb[0].mxu0 %v710
  %v964 = vpop.f32.mrb[0].mxu0
  %v965 = vadd.f32 %v763, %v964
  %v966 = vpop.f32.mrb[0].mxu0
  %v967 = vadd.f32 %v767, %v966
  %v968 = vpop.f32.mrb[0].mxu0
  %v969 = vadd.f32 %v763, %v968
  %v970 = vpop.f32.mrb[0].mxu0
  %v971 = vadd.f32 %v767, %v970
  %972 = vmatprep.mubr.bf16.mxu0 %v713
  %973 = vmatmul.mubr.bf16.gmra.mrb[0].mxu0 %v712
  %v974 = vpop.f32.mrb[0].mxu0
  %v975 = vadd.f32 %v763, %v974
  %v976 = vpop.f32.mrb[0].mxu0
  %v977 = vadd.f32 %v767, %v976
  %v978 = vpop.f32.mrb[0].mxu0
  %v979 = vadd.f32 %v763, %v978
  %v980 = vpop.f32.mrb[0].mxu0
  %v981 = vadd.f32 %v767, %v980
  %982 = vmatprep.mubr.bf16.mxu0 %v715
  %983 = vmatmul.mubr.bf16.gmra.mrb[0].mxu0 %v714
  %v984 = vpop.f32.mrb[0].mxu0
  %v985 = vadd.f32 %v763, %v984
  %v986 = vpop.f32.mrb[0].mxu0
  %v987 = vadd.f32 %v767, %v986
  %v988 = vpop.f32.mrb[0].mxu0
  %v989 = vadd.f32 %v763, %v988
  %v990 = vpop.f32.mrb[0].mxu0
  %v991 = vadd.f32 %v767, %v990
  %992 = vmatprep.mubr.bf16.mxu0 %v717
  %993 = vmatmul.mubr.bf16.gmra.mrb[0].mxu0 %v716
  %v994 = vpop.f32.mrb[0].mxu0
  %v995 = vadd.f32 %v763, %v994
  %v996 = vpop.f32.mrb[0].mxu0
  %v997 = vadd.f32 %v767, %v996
  %v998 = vpop.f32.mrb[0].mxu0
  %v999 = vadd.f32 %v763, %v998
  %v1000 = vpop.f32.mrb[0].mxu0
  %v1001 = vadd.f32 %v767, %v1000
  %1002 = vmatprep.mubr.bf16.mxu0 %v719
  %1003 = vmatmul.mubr.bf16.gmra.mrb[0].mxu0 %v718
  %v1004 = vpop.f32.mrb[0].mxu0
  %v1005 = vadd.f32 %v763, %v1004
  %v1006 = vpop.f32.mrb[0].mxu0
  %v1007 = vadd.f32 %v767, %v1006
  %v1008 = vpop.f32.mrb[0].mxu0
  %v1009 = vadd.f32 %v763, %v1008
  %v1010 = vpop.f32.mrb[0].mxu0
  %v1011 = vadd.f32 %v767, %v1010
  %1012 = vmatprep.mubr.bf16.mxu0 %v721
  %1013 = vmatmul.mubr.bf16.gmra.mrb[0].mxu0 %v720
  %v1014 = vpop.f32.mrb[0].mxu0
  %v1015 = vadd.f32 %v763, %v1014
  %v1016 = vpop.f32.mrb[0].mxu0
  %v1017 = vadd.f32 %v767, %v1016
  %v1018 = vpop.f32.mrb[0].mxu0
  %v1019 = vadd.f32 %v763, %v1018
  %v1020 = vpop.f32.mrb[0].mxu0
  %v1021 = vadd.f32 %v767, %v1020
  %1022 = vmatprep.mubr.bf16.mxu0 %v723
  %1023 = vmatmul.mubr.bf16.gmra.mrb[0].mxu0 %v722
  %v1024 = vpop.f32.mrb[0].mxu0
  %v1025 = vadd.f32 %v763, %v1024
  %v1026 = vpop.f32.mrb[0].mxu0
  %v1027 = vadd.f32 %v767, %v1026
  %v1028 = vpop.f32.mrb[0].mxu0
  %v1029 = vadd.f32 %v763, %v1028
  %v1030 = vpop.f32.mrb[0].mxu0
  %v1031 = vadd.f32 %v767, %v1030
  %1032 = vmatprep.mubr.bf16.mxu0 %v725
  %1033 = vmatmul.mubr.bf16.gmra.mrb[0].mxu0 %v724
  %v1034 = vpop.f32.mrb[0].mxu0
  %v1035 = vadd.f32 %v763, %v1034
  %v1036 = vpop.f32.mrb[0].mxu0
  %v1037 = vadd.f32 %v767, %v1036
  %v1038 = vpop.f32.mrb[0].mxu0
  %v1039 = vadd.f32 %v763, %v1038
  %v1040 = vpop.f32.mrb[0].mxu0
  %v1041 = vadd.f32 %v767, %v1040
  %1042 = vdwg.mxu0
  %vm1043 = vcmp.ge.f32.partialorder %v967, 0.0
  %vm1044 = vcmp.ge.f32.partialorder %v971, 0.0
  %vm1045 = vcmp.ge.f32.partialorder %v977, 0.0
  %vm1046 = vcmp.ge.f32.partialorder %v981, 0.0
  %vm1047 = vcmp.ge.f32.partialorder %v987, 0.0
  %vm1048 = vcmp.ge.f32.partialorder %v991, 0.0
  %vm1049 = vcmp.ge.f32.partialorder %v997, 0.0
  %vm1050 = vcmp.ge.f32.partialorder %v1001, 0.0
  %vm1051 = vcmp.ge.f32.partialorder %v1007, 0.0
  %vm1052 = vcmp.ge.f32.partialorder %v1011, 0.0
  %vm1053 = vcmp.ge.f32.partialorder %v1017, 0.0
  %vm1054 = vcmp.ge.f32.partialorder %v1021, 0.0
  %vm1055 = vcmp.ge.f32.partialorder %v1027, 0.0
  %vm1056 = vcmp.ge.f32.partialorder %v1031, 0.0
  %vm1057 = vcmp.ge.f32.partialorder %v1037, 0.0
  %vm1058 = vcmp.ge.f32.partialorder %v1041, 0.0
  %v1059 = vmul.f32 %v967, 0.2
  %v1060 = vmul.f32 %v971, 0.2
  %v1061 = vmul.f32 %v977, 0.2
  %v1062 = vmul.f32 %v981, 0.2
  %v1063 = vmul.f32 %v987, 0.2
  %v1064 = vmul.f32 %v991, 0.2
  %v1065 = vmul.f32 %v997, 0.2
  %v1066 = vmul.f32 %v1001, 0.2
  %v1067 = vmul.f32 %v1007, 0.2
  %v1068 = vmul.f32 %v1011, 0.2
  %v1069 = vmul.f32 %v1017, 0.2
  %v1070 = vmul.f32 %v1021, 0.2
  %v1071 = vmul.f32 %v1027, 0.2
  %v1072 = vmul.f32 %v1031, 0.2
  %v1073 = vmul.f32 %v1037, 0.2
  %v1074 = vmul.f32 %v1041, 0.2
  %v1075 = vsel %vm1043, %v967, %v1059
  %v1076 = vsel %vm1044, %v971, %v1060
  %v1077 = vsel %vm1045, %v977, %v1061
  %v1078 = vsel %vm1046, %v981, %v1062
  %v1079 = vsel %vm1047, %v987, %v1063
  %v1080 = vsel %vm1048, %v991, %v1064
  %v1081 = vsel %vm1049, %v997, %v1065
  %v1082 = vsel %vm1050, %v1001, %v1066
  %v1083 = vsel %vm1051, %v1007, %v1067
  %v1084 = vsel %vm1052, %v1011, %v1068
  %v1085 = vsel %vm1053, %v1017, %v1069
  %v1086 = vsel %vm1054, %v1021, %v1070
  %v1087 = vsel %vm1055, %v1027, %v1071
  %v1088 = vsel %vm1056, %v1031, %v1072
  %v1089 = vsel %vm1057, %v1037, %v1073
  %v1090 = vsel %vm1058, %v1041, %v1074
  %vm1091 = vcmask 572928
  %v1092 = vsel %vm1091, %v1075, -inf
  %1093 = vmax.xlane.f32.xlu0 %v1092
  %v1094 = vpop.xlane.xlu0 %1093
  %v1095 = vsel %vm1091, %v1076, -inf
  %1096 = vmax.xlane.f32.xlu0 %v1095
  %v1097 = vpop.xlane.xlu0 %1096
  %v1098 = vsel %vm1091, %v1077, -inf
  %1099 = vmax.xlane.f32.xlu0 %v1098
  %v1100 = vpop.xlane.xlu0 %1099
  %v1101 = vsel %vm1091, %v1078, -inf
  %1102 = vmax.xlane.f32.xlu0 %v1101
  %v1103 = vpop.xlane.xlu0 %1102
  %v1104 = vsel %vm1091, %v1079, -inf
  %1105 = vmax.xlane.f32.xlu0 %v1104
  %v1106 = vpop.xlane.xlu0 %1105
  %v1107 = vsel %vm1091, %v1080, -inf
  %1108 = vmax.xlane.f32.xlu0 %v1107
  %v1109 = vpop.xlane.xlu0 %1108
  %v1110 = vsel %vm1091, %v1081, -inf
  %1111 = vmax.xlane.f32.xlu0 %v1110
  %v1112 = vpop.xlane.xlu0 %1111
  %v1113 = vsel %vm1091, %v1082, -inf
  %1114 = vmax.xlane.f32.xlu0 %v1113
  %v1115 = vpop.xlane.xlu0 %1114
  %v1116 = vsel %vm1091, %v1083, -inf
  %1117 = vmax.xlane.f32.xlu0 %v1116
  %v1118 = vpop.xlane.xlu0 %1117
  %v1119 = vsel %vm1091, %v1084, -inf
  %1120 = vmax.xlane.f32.xlu0 %v1119
  %v1121 = vpop.xlane.xlu0 %1120
  %v1122 = vsel %vm1091, %v1085, -inf
  %1123 = vmax.xlane.f32.xlu0 %v1122
  %v1124 = vpop.xlane.xlu0 %1123
  %v1125 = vsel %vm1091, %v1086, -inf
  %1126 = vmax.xlane.f32.xlu0 %v1125
  %v1127 = vpop.xlane.xlu0 %1126
  %v1128 = vsel %vm1091, %v1087, -inf
  %1129 = vmax.xlane.f32.xlu0 %v1128
  %v1130 = vpop.xlane.xlu0 %1129
  %v1131 = vsel %vm1091, %v1088, -inf
  %1132 = vmax.xlane.f32.xlu0 %v1131
  %v1133 = vpop.xlane.xlu0 %1132
  %v1134 = vsel %vm1091, %v1089, -inf
  %1135 = vmax.xlane.f32.xlu0 %v1134
  %v1136 = vpop.xlane.xlu0 %1135
  %v1137 = vsel %vm1091, %v1090, -inf
  %1138 = vmax.xlane.f32.xlu0 %v1137
  %v1139 = vpop.xlane.xlu0 %1138
  %v1140 = vsub.f32 %v1075, %v1094
  %v1141 = vsub.f32 %v1076, %v1097
  %v1142 = vsub.f32 %v1077, %v1100
  %v1143 = vsub.f32 %v1078, %v1103
  %v1144 = vsub.f32 %v1079, %v1106
  %v1145 = vsub.f32 %v1080, %v1109
  %v1146 = vsub.f32 %v1081, %v1112
  %v1147 = vsub.f32 %v1082, %v1115
  %v1148 = vsub.f32 %v1083, %v1118
  %v1149 = vsub.f32 %v1084, %v1121
  %v1150 = vsub.f32 %v1085, %v1124
  %v1151 = vsub.f32 %v1086, %v1127
  %v1152 = vsub.f32 %v1087, %v1130
  %v1153 = vsub.f32 %v1088, %v1133
  %v1154 = vsub.f32 %v1089, %v1136
  %v1155 = vsub.f32 %v1090, %v1139
  %v1156 = vmul.f32 %v1140, 1.442695
  %v1157 = vpow.pop %v1156
  %v1158 = vmul.f32 %v1141, 1.442695
  %v1159 = vpow.pop %v1158
  %v1160 = vmul.f32 %v1142, 1.442695
  %v1161 = vpow.pop %v1160
  %v1162 = vmul.f32 %v1143, 1.442695
  %v1163 = vpow.pop %v1162
  %v1164 = vmul.f32 %v1144, 1.442695
  %v1165 = vpow.pop %v1164
  %v1166 = vmul.f32 %v1145, 1.442695
  %v1167 = vpow.pop %v1166
  %v1168 = vmul.f32 %v1146, 1.442695
  %v1169 = vpow.pop %v1168
  %v1170 = vmul.f32 %v1147, 1.442695
  %v1171 = vpow.pop %v1170
  %v1172 = vmul.f32 %v1148, 1.442695
  %v1173 = vpow.pop %v1172
  %v1174 = vmul.f32 %v1149, 1.442695
  %v1175 = vpow.pop %v1174
  %v1176 = vmul.f32 %v1150, 1.442695
  %v1177 = vpow.pop %v1176
  %v1178 = vmul.f32 %v1151, 1.442695
  %v1179 = vpow.pop %v1178
  %v1180 = vmul.f32 %v1152, 1.442695
  %v1181 = vpow.pop %v1180
  %v1182 = vmul.f32 %v1153, 1.442695
  %v1183 = vpow.pop %v1182
  %v1184 = vmul.f32 %v1154, 1.442695
  %v1185 = vpow.pop %v1184
  %v1186 = vmul.f32 %v1155, 1.442695
  %v1187 = vpow.pop %v1186
  %1204 = vrot.lane.b32.xlu0 %v1157, 64
  %v1205 = vpop.permute.xlu0 %1204
  %1206 = vrot.lane.b32.xlu0 %v1159, 64
  %v1207 = vpop.permute.xlu0 %1206
  %1208 = vrot.lane.b32.xlu0 %v1161, 64
  %v1209 = vpop.permute.xlu0 %1208
  %1210 = vrot.lane.b32.xlu0 %v1163, 64
  %v1211 = vpop.permute.xlu0 %1210
  %1212 = vrot.lane.b32.xlu0 %v1165, 64
  %v1213 = vpop.permute.xlu0 %1212
  %1214 = vrot.lane.b32.xlu0 %v1167, 64
  %v1215 = vpop.permute.xlu0 %1214
  %1216 = vrot.lane.b32.xlu0 %v1169, 64
  %v1217 = vpop.permute.xlu0 %1216
  %1218 = vrot.lane.b32.xlu0 %v1171, 64
  %v1219 = vpop.permute.xlu0 %1218
  %1220 = vrot.lane.b32.xlu0 %v1173, 64
  %v1221 = vpop.permute.xlu0 %1220
  %1222 = vrot.lane.b32.xlu0 %v1175, 64
  %v1223 = vpop.permute.xlu0 %1222
  %1224 = vrot.lane.b32.xlu0 %v1177, 64
  %v1225 = vpop.permute.xlu0 %1224
  %1226 = vrot.lane.b32.xlu0 %v1179, 64
  %v1227 = vpop.permute.xlu0 %1226
  %1228 = vrot.lane.b32.xlu0 %v1181, 64
  %v1229 = vpop.permute.xlu0 %1228
  %1230 = vrot.lane.b32.xlu0 %v1183, 64
  %v1231 = vpop.permute.xlu0 %1230
  %1232 = vrot.lane.b32.xlu0 %v1185, 64
  %v1233 = vpop.permute.xlu0 %1232
  %1234 = vrot.lane.b32.xlu0 %v1187, 64
  %v1235 = vpop.permute.xlu0 %1234
  %vm1252 = vcmask 23552
  %v1253 = vsel %vm1252, %v1205, 0.0
  %1254 = vadd.xlane.f32.xlu0 %v1253
  %v1255 = vpop.xlane.xlu0 %1254
  %v1256 = vsel %vm1252, %v1207, 0.0
  %1257 = vadd.xlane.f32.xlu0 %v1256
  %v1258 = vpop.xlane.xlu0 %1257
  %v1259 = vsel %vm1252, %v1209, 0.0
  %1260 = vadd.xlane.f32.xlu0 %v1259
  %v1261 = vpop.xlane.xlu0 %1260
  %v1262 = vsel %vm1252, %v1211, 0.0
  %1263 = vadd.xlane.f32.xlu0 %v1262
  %v1264 = vpop.xlane.xlu0 %1263
  %v1265 = vsel %vm1252, %v1213, 0.0
  %1266 = vadd.xlane.f32.xlu0 %v1265
  %v1267 = vpop.xlane.xlu0 %1266
  %v1268 = vsel %vm1252, %v1215, 0.0
  %1269 = vadd.xlane.f32.xlu0 %v1268
  %v1270 = vpop.xlane.xlu0 %1269
  %v1271 = vsel %vm1252, %v1217, 0.0
  %1272 = vadd.xlane.f32.xlu0 %v1271
  %v1273 = vpop.xlane.xlu0 %1272
  %v1274 = vsel %vm1252, %v1219, 0.0
  %1275 = vadd.xlane.f32.xlu0 %v1274
  %v1276 = vpop.xlane.xlu0 %1275
  %v1277 = vsel %vm1252, %v1221, 0.0
  %1278 = vadd.xlane.f32.xlu0 %v1277
  %v1279 = vpop.xlane.xlu0 %1278
  %v1280 = vsel %vm1252, %v1223, 0.0
  %1281 = vadd.xlane.f32.xlu0 %v1280
  %v1282 = vpop.xlane.xlu0 %1281
  %v1283 = vsel %vm1252, %v1225, 0.0
  %1284 = vadd.xlane.f32.xlu0 %v1283
  %v1285 = vpop.xlane.xlu0 %1284
  %v1286 = vsel %vm1252, %v1227, 0.0
  %1287 = vadd.xlane.f32.xlu0 %v1286
  %v1288 = vpop.xlane.xlu0 %1287
  %v1289 = vsel %vm1252, %v1229, 0.0
  %1290 = vadd.xlane.f32.xlu0 %v1289
  %v1291 = vpop.xlane.xlu0 %1290
  %v1292 = vsel %vm1252, %v1231, 0.0
  %1293 = vadd.xlane.f32.xlu0 %v1292
  %v1294 = vpop.xlane.xlu0 %1293
  %v1295 = vsel %vm1252, %v1233, 0.0
  %1296 = vadd.xlane.f32.xlu0 %v1295
  %v1297 = vpop.xlane.xlu0 %1296
  %v1298 = vsel %vm1252, %v1235, 0.0
  %1299 = vadd.xlane.f32.xlu0 %v1298
  %v1300 = vpop.xlane.xlu0 %1299
  %1301 = vrot.lane.b32.xlu0 %v1157, 61
  %v1302 = vpop.permute.xlu0 %1301
  %1303 = vrot.lane.b32.xlu0 %v1159, 61
  %v1304 = vpop.permute.xlu0 %1303
  %1305 = vrot.lane.b32.xlu0 %v1161, 61
  %v1306 = vpop.permute.xlu0 %1305
  %1307 = vrot.lane.b32.xlu0 %v1163, 61
  %v1308 = vpop.permute.xlu0 %1307
  %1309 = vrot.lane.b32.xlu0 %v1165, 61
  %v1310 = vpop.permute.xlu0 %1309
  %1311 = vrot.lane.b32.xlu0 %v1167, 61
  %v1312 = vpop.permute.xlu0 %1311
  %1313 = vrot.lane.b32.xlu0 %v1169, 61
  %v1314 = vpop.permute.xlu0 %1313
  %1315 = vrot.lane.b32.xlu0 %v1171, 61
  %v1316 = vpop.permute.xlu0 %1315
  %1317 = vrot.lane.b32.xlu0 %v1173, 61
  %v1318 = vpop.permute.xlu0 %1317
  %1319 = vrot.lane.b32.xlu0 %v1175, 61
  %v1320 = vpop.permute.xlu0 %1319
  %1321 = vrot.lane.b32.xlu0 %v1177, 61
  %v1322 = vpop.permute.xlu0 %1321
  %1323 = vrot.lane.b32.xlu0 %v1179, 61
  %v1324 = vpop.permute.xlu0 %1323
  %1325 = vrot.lane.b32.xlu0 %v1181, 61
  %v1326 = vpop.permute.xlu0 %1325
  %1327 = vrot.lane.b32.xlu0 %v1183, 61
  %v1328 = vpop.permute.xlu0 %1327
  %1329 = vrot.lane.b32.xlu0 %v1185, 61
  %v1330 = vpop.permute.xlu0 %1329
  %1331 = vrot.lane.b32.xlu0 %v1187, 61
  %v1332 = vpop.permute.xlu0 %1331
  %v1349 = vsel %vm1252, %v1302, 0.0
  %1350 = vadd.xlane.f32.xlu0 %v1349
  %v1351 = vpop.xlane.xlu0 %1350
  %v1352 = vsel %vm1252, %v1304, 0.0
  %1353 = vadd.xlane.f32.xlu0 %v1352
  %v1354 = vpop.xlane.xlu0 %1353
  %v1355 = vsel %vm1252, %v1306, 0.0
  %1356 = vadd.xlane.f32.xlu0 %v1355
  %v1357 = vpop.xlane.xlu0 %1356
  %v1358 = vsel %vm1252, %v1308, 0.0
  %1359 = vadd.xlane.f32.xlu0 %v1358
  %v1360 = vpop.xlane.xlu0 %1359
  %v1361 = vsel %vm1252, %v1310, 0.0
  %1362 = vadd.xlane.f32.xlu0 %v1361
  %v1363 = vpop.xlane.xlu0 %1362
  %v1364 = vsel %vm1252, %v1312, 0.0
  %1365 = vadd.xlane.f32.xlu0 %v1364
  %v1366 = vpop.xlane.xlu0 %1365
  %v1367 = vsel %vm1252, %v1314, 0.0
  %1368 = vadd.xlane.f32.xlu0 %v1367
  %v1369 = vpop.xlane.xlu0 %1368
  %v1370 = vsel %vm1252, %v1316, 0.0
  %1371 = vadd.xlane.f32.xlu0 %v1370
  %v1372 = vpop.xlane.xlu0 %1371
  %v1373 = vsel %vm1252, %v1318, 0.0
  %1374 = vadd.xlane.f32.xlu0 %v1373
  %v1375 = vpop.xlane.xlu0 %1374
  %v1376 = vsel %vm1252, %v1320, 0.0
  %1377 = vadd.xlane.f32.xlu0 %v1376
  %v1378 = vpop.xlane.xlu0 %1377
  %v1379 = vsel %vm1252, %v1322, 0.0
  %1380 = vadd.xlane.f32.xlu0 %v1379
  %v1381 = vpop.xlane.xlu0 %1380
  %v1382 = vsel %vm1252, %v1324, 0.0
  %1383 = vadd.xlane.f32.xlu0 %v1382
  %v1384 = vpop.xlane.xlu0 %1383
  %v1385 = vsel %vm1252, %v1326, 0.0
  %1386 = vadd.xlane.f32.xlu0 %v1385
  %v1387 = vpop.xlane.xlu0 %1386
  %v1388 = vsel %vm1252, %v1328, 0.0
  %1389 = vadd.xlane.f32.xlu0 %v1388
  %v1390 = vpop.xlane.xlu0 %1389
  %v1391 = vsel %vm1252, %v1330, 0.0
  %1392 = vadd.xlane.f32.xlu0 %v1391
  %v1393 = vpop.xlane.xlu0 %1392
  %v1394 = vsel %vm1252, %v1332, 0.0
  %1395 = vadd.xlane.f32.xlu0 %v1394
  %v1396 = vpop.xlane.xlu0 %1395
  %v1397 = vrcp.pop %v1255
  %v1398 = vmul.f32 %v1157, %v1397
  %v1399 = vrcp.pop %v1258
  %v1400 = vmul.f32 %v1159, %v1399
  %v1401 = vrcp.pop %v1261
  %v1402 = vmul.f32 %v1161, %v1401
  %v1403 = vrcp.pop %v1264
  %v1404 = vmul.f32 %v1163, %v1403
  %v1405 = vrcp.pop %v1267
  %v1406 = vmul.f32 %v1165, %v1405
  %v1407 = vrcp.pop %v1270
  %v1408 = vmul.f32 %v1167, %v1407
  %v1409 = vrcp.pop %v1273
  %v1410 = vmul.f32 %v1169, %v1409
  %v1411 = vrcp.pop %v1276
  %v1412 = vmul.f32 %v1171, %v1411
  %v1413 = vrcp.pop %v1279
  %v1414 = vmul.f32 %v1173, %v1413
  %v1415 = vrcp.pop %v1282
  %v1416 = vmul.f32 %v1175, %v1415
  %v1417 = vrcp.pop %v1285
  %v1418 = vmul.f32 %v1177, %v1417
  %v1419 = vrcp.pop %v1288
  %v1420 = vmul.f32 %v1179, %v1419
  %v1421 = vrcp.pop %v1291
  %v1422 = vmul.f32 %v1181, %v1421
  %v1423 = vrcp.pop %v1294
  %v1424 = vmul.f32 %v1183, %v1423
  %v1425 = vrcp.pop %v1297
  %v1426 = vmul.f32 %v1185, %v1425
  %v1427 = vrcp.pop %v1300
  %v1428 = vmul.f32 %v1187, %v1427
  %v1429 = vrcp.pop %v1351
  %v1430 = vmul.f32 %v1157, %v1429
  %v1431 = vrcp.pop %v1354
  %v1432 = vmul.f32 %v1159, %v1431
  %v1433 = vrcp.pop %v1357
  %v1434 = vmul.f32 %v1161, %v1433
  %v1435 = vrcp.pop %v1360
  %v1436 = vmul.f32 %v1163, %v1435
  %v1437 = vrcp.pop %v1363
  %v1438 = vmul.f32 %v1165, %v1437
  %v1439 = vrcp.pop %v1366
  %v1440 = vmul.f32 %v1167, %v1439
  %v1441 = vrcp.pop %v1369
  %v1442 = vmul.f32 %v1169, %v1441
  %v1443 = vrcp.pop %v1372
  %v1444 = vmul.f32 %v1171, %v1443
  %v1445 = vrcp.pop %v1375
  %v1446 = vmul.f32 %v1173, %v1445
  %v1447 = vrcp.pop %v1378
  %v1448 = vmul.f32 %v1175, %v1447
  %v1449 = vrcp.pop %v1381
  %v1450 = vmul.f32 %v1177, %v1449
  %v1451 = vrcp.pop %v1384
  %v1452 = vmul.f32 %v1179, %v1451
  %v1453 = vrcp.pop %v1387
  %v1454 = vmul.f32 %v1181, %v1453
  %v1455 = vrcp.pop %v1390
  %v1456 = vmul.f32 %v1183, %v1455
  %v1457 = vrcp.pop %v1393
  %v1458 = vmul.f32 %v1185, %v1457
  %v1459 = vrcp.pop %v1396
  %v1460 = vmul.f32 %v1187, %v1459
  %1477 = vrot.lane.b32.xlu0 %v1398, 64
  %v1478 = vpop.permute.xlu0 %1477
  %1479 = vrot.lane.b32.xlu0 %v1400, 64
  %v1480 = vpop.permute.xlu0 %1479
  %1481 = vrot.lane.b32.xlu0 %v1402, 64
  %v1482 = vpop.permute.xlu0 %1481
  %1483 = vrot.lane.b32.xlu0 %v1404, 64
  %v1484 = vpop.permute.xlu0 %1483
  %1485 = vrot.lane.b32.xlu0 %v1406, 64
  %v1486 = vpop.permute.xlu0 %1485
  %1487 = vrot.lane.b32.xlu0 %v1408, 64
  %v1488 = vpop.permute.xlu0 %1487
  %1489 = vrot.lane.b32.xlu0 %v1410, 64
  %v1490 = vpop.permute.xlu0 %1489
  %1491 = vrot.lane.b32.xlu0 %v1412, 64
  %v1492 = vpop.permute.xlu0 %1491
  %1493 = vrot.lane.b32.xlu0 %v1414, 64
  %v1494 = vpop.permute.xlu0 %1493
  %1495 = vrot.lane.b32.xlu0 %v1416, 64
  %v1496 = vpop.permute.xlu0 %1495
  %1497 = vrot.lane.b32.xlu0 %v1418, 64
  %v1498 = vpop.permute.xlu0 %1497
  %1499 = vrot.lane.b32.xlu0 %v1420, 64
  %v1500 = vpop.permute.xlu0 %1499
  %1501 = vrot.lane.b32.xlu0 %v1422, 64
  %v1502 = vpop.permute.xlu0 %1501
  %1503 = vrot.lane.b32.xlu0 %v1424, 64
  %v1504 = vpop.permute.xlu0 %1503
  %1505 = vrot.lane.b32.xlu0 %v1426, 64
  %v1506 = vpop.permute.xlu0 %1505
  %1507 = vrot.lane.b32.xlu0 %v1428, 64
  %v1508 = vpop.permute.xlu0 %1507
  %1541 = vrot.lane.b32.xlu0 %v1430, 64
  %v1542 = vpop.permute.xlu0 %1541
  %1543 = vrot.lane.b32.xlu0 %v1432, 64
  %v1544 = vpop.permute.xlu0 %1543
  %1545 = vrot.lane.b32.xlu0 %v1434, 64
  %v1546 = vpop.permute.xlu0 %1545
  %1547 = vrot.lane.b32.xlu0 %v1436, 64
  %v1548 = vpop.permute.xlu0 %1547
  %1549 = vrot.lane.b32.xlu0 %v1438, 64
  %v1550 = vpop.permute.xlu0 %1549
  %1551 = vrot.lane.b32.xlu0 %v1440, 64
  %v1552 = vpop.permute.xlu0 %1551
  %1553 = vrot.lane.b32.xlu0 %v1442, 64
  %v1554 = vpop.permute.xlu0 %1553
  %1555 = vrot.lane.b32.xlu0 %v1444, 64
  %v1556 = vpop.permute.xlu0 %1555
  %1557 = vrot.lane.b32.xlu0 %v1446, 64
  %v1558 = vpop.permute.xlu0 %1557
  %1559 = vrot.lane.b32.xlu0 %v1448, 64
  %v1560 = vpop.permute.xlu0 %1559
  %1561 = vrot.lane.b32.xlu0 %v1450, 64
  %v1562 = vpop.permute.xlu0 %1561
  %1563 = vrot.lane.b32.xlu0 %v1452, 64
  %v1564 = vpop.permute.xlu0 %1563
  %1565 = vrot.lane.b32.xlu0 %v1454, 64
  %v1566 = vpop.permute.xlu0 %1565
  %1567 = vrot.lane.b32.xlu0 %v1456, 64
  %v1568 = vpop.permute.xlu0 %1567
  %1569 = vrot.lane.b32.xlu0 %v1458, 64
  %v1570 = vpop.permute.xlu0 %1569
  %1571 = vrot.lane.b32.xlu0 %v1460, 64
  %v1572 = vpop.permute.xlu0 %1571
  %v1589 = vsel %vm1252, %v1478, %v1542
  %v1590 = vsel %vm1252, %v1480, %v1544
  %v1591 = vsel %vm1252, %v1482, %v1546
  %v1592 = vsel %vm1252, %v1484, %v1548
  %v1593 = vsel %vm1252, %v1486, %v1550
  %v1594 = vsel %vm1252, %v1488, %v1552
  %v1595 = vsel %vm1252, %v1490, %v1554
  %v1596 = vsel %vm1252, %v1492, %v1556
  %v1597 = vsel %vm1252, %v1494, %v1558
  %v1598 = vsel %vm1252, %v1496, %v1560
  %v1599 = vsel %vm1252, %v1498, %v1562
  %v1600 = vsel %vm1252, %v1500, %v1564
  %v1601 = vsel %vm1252, %v1502, %v1566
  %v1602 = vsel %vm1252, %v1504, %v1568
  %v1603 = vsel %vm1252, %v1506, %v1570
  %v1604 = vsel %vm1252, %v1508, %v1572
  %v1605 = vld [vmem:[%s5] sm:$0x3f]
  %v1606 = vld [vmem:[%s5 + $0x8] sm:$0x3f]
  %vm1607 = vcmask 48128
  %v1609 = vsel %vm1607, %v1589, 0
  %v1612 = vsel %vm1607, %v1590, 0
  %v1615 = vsel %vm1607, %v1591, 0
  %v1618 = vsel %vm1607, %v1592, 0
  %v1621 = vsel %vm1607, %v1593, 0
  %v1624 = vsel %vm1607, %v1594, 0
  %v1627 = vsel %vm1607, %v1595, 0
  %v1630 = vsel %vm1607, %v1596, 0
  %v1633 = vsel %vm1607, %v1597, 0
  %v1636 = vsel %vm1607, %v1598, 0
  %v1639 = vsel %vm1607, %v1599, 0
  %v1642 = vsel %vm1607, %v1600, 0
  %v1645 = vsel %vm1607, %v1601, 0
  %v1648 = vsel %vm1607, %v1602, 0
  %v1651 = vsel %vm1607, %v1603, 0
  %v1654 = vsel %vm1607, %v1604, 0
  %vm1656 = vcmask 1045504
  %v1658 = vsel %vm1656, %v1605, 0
  %v1661 = vsel %vm1656, %v1606, 0
  %1663 = vmatprep.subr.mxu0 %v1661
  %1664 = vmatpush1.msra.mxu0 %v1658
  %1665 = vmatprep.subr.mxu0 0.0
  %1666 = vmatpush1.msra.mxu0 0.0
  %1667 = vmatprep.subr.mxu0 0.0
  %1668 = vmatpush1.msra.mxu0 0.0
  %1669 = vmatprep.subr.mxu0 0.0
  %1670 = vmatpush1.msra.mxu0 0.0
  %1671 = vmatprep.subr.mxu0 0.0
  %1672 = vmatpush1.msra.mxu0 0.0
  %1673 = vmatprep.subr.mxu0 0.0
  %1674 = vmatpush1.msra.mxu0 0.0
  %1675 = vmatprep.subr.mxu0 0.0
  %1676 = vmatpush1.msra.mxu0 0.0
  %1677 = vmatprep.subr.mxu0 0.0
  %1678 = vmatpush1.msra.mxu0 0.0
  %1679 = vmatprep.subr.mxu0 0.0
  %1680 = vmatpush1.msra.mxu0 0.0
  %1681 = vmatprep.subr.mxu0 0.0
  %1682 = vmatpush1.msra.mxu0 0.0
  %1683 = vmatprep.subr.mxu0 0.0
  %1684 = vmatpush1.msra.mxu0 0.0
  %1685 = vmatprep.subr.mxu0 0.0
  %1686 = vmatpush1.msra.mxu0 0.0
  %1687 = vmatprep.subr.mxu0 0.0
  %1688 = vmatpush1.msra.mxu0 0.0
  %1689 = vmatprep.subr.mxu0 0.0
  %1690 = vmatpush1.msra.mxu0 0.0
  %1691 = vmatprep.subr.mxu0 0.0
  %1692 = vmatpush1.msra.mxu0 0.0
  %1693 = vmatprep.subr.mxu0 0.0
  %1694 = vmatpush1.msra.mxu0 0.0
  %1695 = vmatprep.subr.mxu0 0.0
  %1696 = vmatpush1.msra.mxu0 0.0
  %1697 = vmatprep.subr.mxu0 0.0
  %1698 = vmatpush1.msra.mxu0 0.0
  %1699 = vmatprep.subr.mxu0 0.0
  %1700 = vmatpush1.msra.mxu0 0.0
  %1701 = vmatprep.subr.mxu0 0.0
  %1702 = vmatpush1.msra.mxu0 0.0
  %1703 = vmatprep.subr.mxu0 0.0
  %1704 = vmatpush1.msra.mxu0 0.0
  %1705 = vmatprep.subr.mxu0 0.0
  %1706 = vmatpush1.msra.mxu0 0.0
  %1707 = vmatprep.subr.mxu0 0.0
  %1708 = vmatpush1.msra.mxu0 0.0
  %1709 = vmatprep.subr.mxu0 0.0
  %1710 = vmatpush1.msra.mxu0 0.0
  %1711 = vmatprep.subr.mxu0 0.0
  %1712 = vmatpush1.msra.mxu0 0.0
  %1713 = vmatprep.subr.mxu0 0.0
  %1714 = vmatpush1.msra.mxu0 0.0
  %1715 = vmatprep.subr.mxu0 0.0
  %1716 = vmatpush1.msra.mxu0 0.0
  %1717 = vmatprep.subr.mxu0 0.0
  %1718 = vmatpush1.msra.mxu0 0.0
  %1719 = vmatprep.subr.mxu0 0.0
  %1720 = vmatpush1.msra.mxu0 0.0
  %1721 = vmatprep.subr.mxu0 0.0
  %1722 = vmatpush1.msra.mxu0 0.0
  %1723 = vmatprep.subr.mxu0 0.0
  %1724 = vmatpush1.msra.mxu0 0.0
  %1725 = vmatprep.subr.mxu0 0.0
  %1726 = vmatpush1.msra.mxu0 0.0
  %1727 = vmatprep.mubr.f32.mxu0 0.0
  %1728 = vmatmul.mubr.f32.gmra.mrb[0].mxu0 %v1609
  %v1729 = vpop.f32.mrb[0].mxu0
  %v1730 = vadd.f32 0.0, %v1729
  %v1731 = vpop.f32.mrb[0].mxu0
  %v1732 = vadd.f32 0.0, %v1731
  %1733 = vmatprep.mubr.f32.mxu0 0.0
  %1734 = vmatmul.mubr.f32.gmra.mrb[0].mxu0 %v1612
  %v1735 = vpop.f32.mrb[0].mxu0
  %v1736 = vadd.f32 0.0, %v1735
  %v1737 = vpop.f32.mrb[0].mxu0
  %v1738 = vadd.f32 0.0, %v1737
  %1739 = vmatprep.mubr.f32.mxu0 0.0
  %1740 = vmatmul.mubr.f32.gmra.mrb[0].mxu0 %v1615
  %v1741 = vpop.f32.mrb[0].mxu0
  %v1742 = vadd.f32 0.0, %v1741
  %v1743 = vpop.f32.mrb[0].mxu0
  %v1744 = vadd.f32 0.0, %v1743
  %1745 = vmatprep.mubr.f32.mxu0 0.0
  %1746 = vmatmul.mubr.f32.gmra.mrb[0].mxu0 %v1618
  %v1747 = vpop.f32.mrb[0].mxu0
  %v1748 = vadd.f32 0.0, %v1747
  %v1749 = vpop.f32.mrb[0].mxu0
  %v1750 = vadd.f32 0.0, %v1749
  %1751 = vmatprep.mubr.f32.mxu0 0.0
  %1752 = vmatmul.mubr.f32.gmra.mrb[0].mxu0 %v1621
  %v1753 = vpop.f32.mrb[0].mxu0
  %v1754 = vadd.f32 0.0, %v1753
  %v1755 = vpop.f32.mrb[0].mxu0
  %v1756 = vadd.f32 0.0, %v1755
  %1757 = vmatprep.mubr.f32.mxu0 0.0
  %1758 = vmatmul.mubr.f32.gmra.mrb[0].mxu0 %v1624
  %v1759 = vpop.f32.mrb[0].mxu0
  %v1760 = vadd.f32 0.0, %v1759
  %v1761 = vpop.f32.mrb[0].mxu0
  %v1762 = vadd.f32 0.0, %v1761
  %1763 = vmatprep.mubr.f32.mxu0 0.0
  %1764 = vmatmul.mubr.f32.gmra.mrb[0].mxu0 %v1627
  %v1765 = vpop.f32.mrb[0].mxu0
  %v1766 = vadd.f32 0.0, %v1765
  %v1767 = vpop.f32.mrb[0].mxu0
  %v1768 = vadd.f32 0.0, %v1767
  %1769 = vmatprep.mubr.f32.mxu0 0.0
  %1770 = vmatmul.mubr.f32.gmra.mrb[0].mxu0 %v1630
  %v1771 = vpop.f32.mrb[0].mxu0
  %v1772 = vadd.f32 0.0, %v1771
  %v1773 = vpop.f32.mrb[0].mxu0
  %v1774 = vadd.f32 0.0, %v1773
  %1775 = vmatprep.mubr.f32.mxu0 0.0
  %1776 = vmatmul.mubr.f32.gmra.mrb[0].mxu0 %v1633
  %v1777 = vpop.f32.mrb[0].mxu0
  %v1778 = vadd.f32 0.0, %v1777
  %v1779 = vpop.f32.mrb[0].mxu0
  %v1780 = vadd.f32 0.0, %v1779
  %1781 = vmatprep.mubr.f32.mxu0 0.0
  %1782 = vmatmul.mubr.f32.gmra.mrb[0].mxu0 %v1636
  %v1783 = vpop.f32.mrb[0].mxu0
  %v1784 = vadd.f32 0.0, %v1783
  %v1785 = vpop.f32.mrb[0].mxu0
  %v1786 = vadd.f32 0.0, %v1785
  %1787 = vmatprep.mubr.f32.mxu0 0.0
  %1788 = vmatmul.mubr.f32.gmra.mrb[0].mxu0 %v1639
  %v1789 = vpop.f32.mrb[0].mxu0
  %v1790 = vadd.f32 0.0, %v1789
  %v1791 = vpop.f32.mrb[0].mxu0
  %v1792 = vadd.f32 0.0, %v1791
  %1793 = vmatprep.mubr.f32.mxu0 0.0
  %1794 = vmatmul.mubr.f32.gmra.mrb[0].mxu0 %v1642
  %v1795 = vpop.f32.mrb[0].mxu0
  %v1796 = vadd.f32 0.0, %v1795
  %v1797 = vpop.f32.mrb[0].mxu0
  %v1798 = vadd.f32 0.0, %v1797
  %1799 = vmatprep.mubr.f32.mxu0 0.0
  %1800 = vmatmul.mubr.f32.gmra.mrb[0].mxu0 %v1645
  %v1801 = vpop.f32.mrb[0].mxu0
  %v1802 = vadd.f32 0.0, %v1801
  %v1803 = vpop.f32.mrb[0].mxu0
  %v1804 = vadd.f32 0.0, %v1803
  %1805 = vmatprep.mubr.f32.mxu0 0.0
  %1806 = vmatmul.mubr.f32.gmra.mrb[0].mxu0 %v1648
  %v1807 = vpop.f32.mrb[0].mxu0
  %v1808 = vadd.f32 0.0, %v1807
  %v1809 = vpop.f32.mrb[0].mxu0
  %v1810 = vadd.f32 0.0, %v1809
  %1811 = vmatprep.mubr.f32.mxu0 0.0
  %1812 = vmatmul.mubr.f32.gmra.mrb[0].mxu0 %v1651
  %v1813 = vpop.f32.mrb[0].mxu0
  %v1814 = vadd.f32 0.0, %v1813
  %v1815 = vpop.f32.mrb[0].mxu0
  %v1816 = vadd.f32 0.0, %v1815
  %1817 = vmatprep.mubr.f32.mxu0 0.0
  %1818 = vmatmul.mubr.f32.gmra.mrb[0].mxu0 %v1654
  %v1819 = vpop.f32.mrb[0].mxu0
  %v1820 = vadd.f32 0.0, %v1819
  %v1821 = vpop.f32.mrb[0].mxu0
  %v1822 = vadd.f32 0.0, %v1821
  %1823 = vdwg.mxu0
  %v1824 = vmul.f32 %v965, %v1730
  %v1825 = vmul.f32 %v967, %v1732
  %v1826 = vmul.f32 %v969, %v1736
  %v1827 = vmul.f32 %v971, %v1738
  %v1828 = vmul.f32 %v975, %v1742
  %v1829 = vmul.f32 %v977, %v1744
  %v1830 = vmul.f32 %v979, %v1748
  %v1831 = vmul.f32 %v981, %v1750
  %v1832 = vmul.f32 %v985, %v1754
  %v1833 = vmul.f32 %v987, %v1756
  %v1834 = vmul.f32 %v989, %v1760
  %v1835 = vmul.f32 %v991, %v1762
  %v1836 = vmul.f32 %v995, %v1766
  %v1837 = vmul.f32 %v997, %v1768
  %v1838 = vmul.f32 %v999, %v1772
  %v1839 = vmul.f32 %v1001, %v1774
  %v1840 = vmul.f32 %v1005, %v1778
  %v1841 = vmul.f32 %v1007, %v1780
  %v1842 = vmul.f32 %v1009, %v1784
  %v1843 = vmul.f32 %v1011, %v1786
  %v1844 = vmul.f32 %v1015, %v1790
  %v1845 = vmul.f32 %v1017, %v1792
  %v1846 = vmul.f32 %v1019, %v1796
  %v1847 = vmul.f32 %v1021, %v1798
  %v1848 = vmul.f32 %v1025, %v1802
  %v1849 = vmul.f32 %v1027, %v1804
  %v1850 = vmul.f32 %v1029, %v1808
  %v1851 = vmul.f32 %v1031, %v1810
  %v1852 = vmul.f32 %v1035, %v1814
  %v1853 = vmul.f32 %v1037, %v1816
  %v1854 = vmul.f32 %v1039, %v1820
  %v1855 = vmul.f32 %v1041, %v1822
  %1872 = vrot.lane.b32.xlu0 %v1824, 64
  %v1873 = vpop.permute.xlu0 %1872
  %1874 = vrot.lane.b32.xlu0 %v1826, 64
  %v1875 = vpop.permute.xlu0 %1874
  %1876 = vrot.lane.b32.xlu0 %v1828, 64
  %v1877 = vpop.permute.xlu0 %1876
  %1878 = vrot.lane.b32.xlu0 %v1830, 64
  %v1879 = vpop.permute.xlu0 %1878
  %1880 = vrot.lane.b32.xlu0 %v1832, 64
  %v1881 = vpop.permute.xlu0 %1880
  %1882 = vrot.lane.b32.xlu0 %v1834, 64
  %v1883 = vpop.permute.xlu0 %1882
  %1884 = vrot.lane.b32.xlu0 %v1836, 64
  %v1885 = vpop.permute.xlu0 %1884
  %1886 = vrot.lane.b32.xlu0 %v1838, 64
  %v1887 = vpop.permute.xlu0 %1886
  %1888 = vrot.lane.b32.xlu0 %v1840, 64
  %v1889 = vpop.permute.xlu0 %1888
  %1890 = vrot.lane.b32.xlu0 %v1842, 64
  %v1891 = vpop.permute.xlu0 %1890
  %1892 = vrot.lane.b32.xlu0 %v1844, 64
  %v1893 = vpop.permute.xlu0 %1892
  %1894 = vrot.lane.b32.xlu0 %v1846, 64
  %v1895 = vpop.permute.xlu0 %1894
  %1896 = vrot.lane.b32.xlu0 %v1848, 64
  %v1897 = vpop.permute.xlu0 %1896
  %1898 = vrot.lane.b32.xlu0 %v1850, 64
  %v1899 = vpop.permute.xlu0 %1898
  %1900 = vrot.lane.b32.xlu0 %v1852, 64
  %v1901 = vpop.permute.xlu0 %1900
  %1902 = vrot.lane.b32.xlu0 %v1854, 64
  %v1903 = vpop.permute.xlu0 %1902
  %v1920 = vadd.f32 %v1824, %v1873
  %v1921 = vadd.f32 %v1826, %v1875
  %v1922 = vadd.f32 %v1828, %v1877
  %v1923 = vadd.f32 %v1830, %v1879
  %v1924 = vadd.f32 %v1832, %v1881
  %v1925 = vadd.f32 %v1834, %v1883
  %v1926 = vadd.f32 %v1836, %v1885
  %v1927 = vadd.f32 %v1838, %v1887
  %v1928 = vadd.f32 %v1840, %v1889
  %v1929 = vadd.f32 %v1842, %v1891
  %v1930 = vadd.f32 %v1844, %v1893
  %v1931 = vadd.f32 %v1846, %v1895
  %v1932 = vadd.f32 %v1848, %v1897
  %v1933 = vadd.f32 %v1850, %v1899
  %v1934 = vadd.f32 %v1852, %v1901
  %v1935 = vadd.f32 %v1854, %v1903
  %v1936 = vadd.f32 %v1920, %v1825
  %v1937 = vadd.f32 %v1921, %v1827
  %v1938 = vadd.f32 %v1922, %v1829
  %v1939 = vadd.f32 %v1923, %v1831
  %v1940 = vadd.f32 %v1924, %v1833
  %v1941 = vadd.f32 %v1925, %v1835
  %v1942 = vadd.f32 %v1926, %v1837
  %v1943 = vadd.f32 %v1927, %v1839
  %v1944 = vadd.f32 %v1928, %v1841
  %v1945 = vadd.f32 %v1929, %v1843
  %v1946 = vadd.f32 %v1930, %v1845
  %v1947 = vadd.f32 %v1931, %v1847
  %v1948 = vadd.f32 %v1932, %v1849
  %v1949 = vadd.f32 %v1933, %v1851
  %v1950 = vadd.f32 %v1934, %v1853
  %v1951 = vadd.f32 %v1935, %v1855
  %v1952 = vadd.f32 %v1936, %v646
  %v1953 = vadd.f32 %v1937, %v648
  %v1954 = vadd.f32 %v1938, %v650
  %v1955 = vadd.f32 %v1939, %v652
  %v1956 = vadd.f32 %v1940, %v654
  %v1957 = vadd.f32 %v1941, %v656
  %v1958 = vadd.f32 %v1942, %v658
  %v1959 = vadd.f32 %v1943, %v660
  %v1960 = vadd.f32 %v1944, %v662
  %v1961 = vadd.f32 %v1945, %v664
  %v1962 = vadd.f32 %v1946, %v666
  %v1963 = vadd.f32 %v1947, %v668
  %v1964 = vadd.f32 %v1948, %v670
  %v1965 = vadd.f32 %v1949, %v672
  %v1966 = vadd.f32 %v1950, %v674
  %v1967 = vadd.f32 %v1951, %v676
  %v1968 = vld [vmem:[%s6] sm:$0x1]
  %v1970 = vlaneseq
  %v1971 = vshrl.u32 %v1970, 7
  %v1972 = vsub.s32 0, %v1971
  %v1973 = vrot.slane %v1968, %v1972
  %v1975 = vmul.f32 %v1952, %v1973
  %v1976 = vmul.f32 %v1953, %v1973
  %v1977 = vmul.f32 %v1954, %v1973
  %v1978 = vmul.f32 %v1955, %v1973
  %v1979 = vmul.f32 %v1956, %v1973
  %v1980 = vmul.f32 %v1957, %v1973
  %v1981 = vmul.f32 %v1958, %v1973
  %v1982 = vmul.f32 %v1959, %v1973
  %v1983 = vmul.f32 %v1960, %v1973
  %v1984 = vmul.f32 %v1961, %v1973
  %v1985 = vmul.f32 %v1962, %v1973
  %v1986 = vmul.f32 %v1963, %v1973
  %v1987 = vmul.f32 %v1964, %v1973
  %v1988 = vmul.f32 %v1965, %v1973
  %v1989 = vmul.f32 %v1966, %v1973
  %v1990 = vmul.f32 %v1967, %v1973
  %v1991 = vld [vmem:[%s7] sm:$0x1]
  %v1993 = vlaneseq
  %v1994 = vshrl.u32 %v1993, 7
  %v1995 = vsub.s32 0, %v1994
  %v1996 = vrot.slane %v1991, %v1995
  %v1998 = vadd.f32 %v1975, %v1996
  %v1999 = vadd.f32 %v1976, %v1996
  %v2000 = vadd.f32 %v1977, %v1996
  %v2001 = vadd.f32 %v1978, %v1996
  %v2002 = vadd.f32 %v1979, %v1996
  %v2003 = vadd.f32 %v1980, %v1996
  %v2004 = vadd.f32 %v1981, %v1996
  %v2005 = vadd.f32 %v1982, %v1996
  %v2006 = vadd.f32 %v1983, %v1996
  %v2007 = vadd.f32 %v1984, %v1996
  %v2008 = vadd.f32 %v1985, %v1996
  %v2009 = vadd.f32 %v1986, %v1996
  %v2010 = vadd.f32 %v1987, %v1996
  %v2011 = vadd.f32 %v1988, %v1996
  %v2012 = vadd.f32 %v1989, %v1996
  %v2013 = vadd.f32 %v1990, %v1996
  %v2014 = vmax.f32 %v1998, 0.0
  %v2015 = vmax.f32 %v1999, 0.0
  %v2016 = vmax.f32 %v2000, 0.0
  %v2017 = vmax.f32 %v2001, 0.0
  %v2018 = vmax.f32 %v2002, 0.0
  %v2019 = vmax.f32 %v2003, 0.0
  %v2020 = vmax.f32 %v2004, 0.0
  %v2021 = vmax.f32 %v2005, 0.0
  %v2022 = vmax.f32 %v2006, 0.0
  %v2023 = vmax.f32 %v2007, 0.0
  %v2024 = vmax.f32 %v2008, 0.0
  %v2025 = vmax.f32 %v2009, 0.0
  %v2026 = vmax.f32 %v2010, 0.0
  %v2027 = vmax.f32 %v2011, 0.0
  %v2028 = vmax.f32 %v2012, 0.0
  %v2029 = vmax.f32 %v2013, 0.0
  %v2030 = vpack.c.bf16 %v2015, %v2014
  %v2031 = vpack.c.bf16 %v2017, %v2016
  %v2032 = vpack.c.bf16 %v2019, %v2018
  %v2033 = vpack.c.bf16 %v2021, %v2020
  %v2034 = vpack.c.bf16 %v2023, %v2022
  %v2035 = vpack.c.bf16 %v2025, %v2024
  %v2036 = vpack.c.bf16 %v2027, %v2026
  %v2037 = vpack.c.bf16 %v2029, %v2028
  %v2038 = vld [vmem:[%s8] sm:$0xf]
  %v2039 = vld [vmem:[%s8 + $0x4] sm:$0xf]
  %v2040 = vld [vmem:[%s8 + $0x8] sm:$0xf]
  %v2041 = vld [vmem:[%s8 + $0xc] sm:$0xf]
  %v2042 = vld [vmem:[%s8 + $0x10] sm:$0xf]
  %v2043 = vld [vmem:[%s8 + $0x14] sm:$0xf]
  %v2044 = vld [vmem:[%s8 + $0x18] sm:$0xf]
  %v2045 = vld [vmem:[%s8 + $0x1c] sm:$0xf]
  %v2046 = vld [vmem:[%s9] sm:$0x1]
  %v2048 = vlaneseq
  %v2049 = vshrl.u32 %v2048, 7
  %v2050 = vsub.s32 0, %v2049
  %v2051 = vrot.slane %v2046, %v2050
  %v2061 = vunpack.c.l.b16 %v2038
  %v2062 = vunpack.c.l.b16 %v2039
  %v2063 = vunpack.c.l.b16 %v2040
  %v2064 = vunpack.c.l.b16 %v2041
  %v2065 = vunpack.c.l.b16 %v2042
  %v2066 = vunpack.c.l.b16 %v2043
  %v2067 = vunpack.c.l.b16 %v2044
  %v2068 = vunpack.c.l.b16 %v2045
  %v2069 = vpack.c.b16 %v2062, %v2061
  %v2070 = vpack.c.b16 %v2064, %v2063
  %v2071 = vpack.c.b16 %v2066, %v2065
  %v2072 = vpack.c.b16 %v2068, %v2067
  %vm2077 = vcmask 523264
  %v2079 = vsel %vm2077, %v2030, 0
  %v2082 = vsel %vm2077, %v2031, 0
  %v2085 = vsel %vm2077, %v2032, 0
  %v2088 = vsel %vm2077, %v2033, 0
  %v2091 = vsel %vm2077, %v2034, 0
  %v2094 = vsel %vm2077, %v2035, 0
  %v2097 = vsel %vm2077, %v2036, 0
  %v2100 = vsel %vm2077, %v2037, 0
  %2102 = vmatprep.subr.bf16.mxu0 0
  %2103 = vmatpush1.bf16.msra.mxu0 %v2069
  %2104 = vmatprep.subr.bf16.mxu0 0
  %2105 = vmatpush1.bf16.msra.mxu0 %v2070
  %2106 = vmatprep.subr.bf16.mxu0 0
  %2107 = vmatpush1.bf16.msra.mxu0 %v2071
  %2108 = vmatprep.subr.bf16.mxu0 0
  %2109 = vmatpush1.bf16.msra.mxu0 %v2072
  %2110 = vmatprep.subr.bf16.mxu0 0
  %2111 = vmatpush1.bf16.msra.mxu0 0
  %2112 = vmatprep.subr.bf16.mxu0 0
  %2113 = vmatpush1.bf16.msra.mxu0 0
  %2114 = vmatprep.subr.bf16.mxu0 0
  %2115 = vmatpush1.bf16.msra.mxu0 0
  %2116 = vmatprep.subr.bf16.mxu0 0
  %2117 = vmatpush1.bf16.msra.mxu0 0
  %2118 = vmatprep.subr.bf16.mxu0 0
  %2119 = vmatpush1.bf16.msra.mxu0 0
  %2120 = vmatprep.subr.bf16.mxu0 0
  %2121 = vmatpush1.bf16.msra.mxu0 0
  %2122 = vmatprep.subr.bf16.mxu0 0
  %2123 = vmatpush1.bf16.msra.mxu0 0
  %2124 = vmatprep.subr.bf16.mxu0 0
  %2125 = vmatpush1.bf16.msra.mxu0 0
  %2126 = vmatprep.subr.bf16.mxu0 0
  %2127 = vmatpush1.bf16.msra.mxu0 0
  %2128 = vmatprep.subr.bf16.mxu0 0
  %2129 = vmatpush1.bf16.msra.mxu0 0
  %2130 = vmatprep.subr.bf16.mxu0 0
  %2131 = vmatpush1.bf16.msra.mxu0 0
  %2132 = vmatprep.subr.bf16.mxu0 0
  %2133 = vmatpush1.bf16.msra.mxu0 0
  %2134 = vmatprep.mubr.bf16.mxu0 0
  %2135 = vmatmul.mubr.bf16.gmra.mrb[0].mxu0 %v2079
  %v2136 = vpop.f32.mrb[0].mxu0
  %v2137 = vadd.f32 %v2051, %v2136
  %v2138 = vpop.f32.mrb[0].mxu0
  %v2139 = vpop.f32.mrb[0].mxu0
  %v2140 = vadd.f32 %v2051, %v2139
  %v2141 = vpop.f32.mrb[0].mxu0
  %2142 = vmatprep.mubr.bf16.mxu0 0
  %2143 = vmatmul.mubr.bf16.gmra.mrb[0].mxu0 %v2082
  %v2144 = vpop.f32.mrb[0].mxu0
  %v2145 = vadd.f32 %v2051, %v2144
  %v2146 = vpop.f32.mrb[0].mxu0
  %v2147 = vpop.f32.mrb[0].mxu0
  %v2148 = vadd.f32 %v2051, %v2147
  %v2149 = vpop.f32.mrb[0].mxu0
  %2150 = vmatprep.mubr.bf16.mxu0 0
  %2151 = vmatmul.mubr.bf16.gmra.mrb[0].mxu0 %v2085
  %v2152 = vpop.f32.mrb[0].mxu0
  %v2153 = vadd.f32 %v2051, %v2152
  %v2154 = vpop.f32.mrb[0].mxu0
  %v2155 = vpop.f32.mrb[0].mxu0
  %v2156 = vadd.f32 %v2051, %v2155
  %v2157 = vpop.f32.mrb[0].mxu0
  %2158 = vmatprep.mubr.bf16.mxu0 0
  %2159 = vmatmul.mubr.bf16.gmra.mrb[0].mxu0 %v2088
  %v2160 = vpop.f32.mrb[0].mxu0
  %v2161 = vadd.f32 %v2051, %v2160
  %v2162 = vpop.f32.mrb[0].mxu0
  %v2163 = vpop.f32.mrb[0].mxu0
  %v2164 = vadd.f32 %v2051, %v2163
  %v2165 = vpop.f32.mrb[0].mxu0
  %2166 = vmatprep.mubr.bf16.mxu0 0
  %2167 = vmatmul.mubr.bf16.gmra.mrb[0].mxu0 %v2091
  %v2168 = vpop.f32.mrb[0].mxu0
  %v2169 = vadd.f32 %v2051, %v2168
  %v2170 = vpop.f32.mrb[0].mxu0
  %v2171 = vpop.f32.mrb[0].mxu0
  %v2172 = vadd.f32 %v2051, %v2171
  %v2173 = vpop.f32.mrb[0].mxu0
  %2174 = vmatprep.mubr.bf16.mxu0 0
  %2175 = vmatmul.mubr.bf16.gmra.mrb[0].mxu0 %v2094
  %v2176 = vpop.f32.mrb[0].mxu0
  %v2177 = vadd.f32 %v2051, %v2176
  %v2178 = vpop.f32.mrb[0].mxu0
  %v2179 = vpop.f32.mrb[0].mxu0
  %v2180 = vadd.f32 %v2051, %v2179
  %v2181 = vpop.f32.mrb[0].mxu0
  %2182 = vmatprep.mubr.bf16.mxu0 0
  %2183 = vmatmul.mubr.bf16.gmra.mrb[0].mxu0 %v2097
  %v2184 = vpop.f32.mrb[0].mxu0
  %v2185 = vadd.f32 %v2051, %v2184
  %v2186 = vpop.f32.mrb[0].mxu0
  %v2187 = vpop.f32.mrb[0].mxu0
  %v2188 = vadd.f32 %v2051, %v2187
  %v2189 = vpop.f32.mrb[0].mxu0
  %2190 = vmatprep.mubr.bf16.mxu0 0
  %2191 = vmatmul.mubr.bf16.gmra.mrb[0].mxu0 %v2100
  %v2192 = vpop.f32.mrb[0].mxu0
  %v2193 = vadd.f32 %v2051, %v2192
  %v2194 = vpop.f32.mrb[0].mxu0
  %v2195 = vpop.f32.mrb[0].mxu0
  %v2196 = vadd.f32 %v2051, %v2195
  %v2197 = vpop.f32.mrb[0].mxu0
  %2198 = vdwg.mxu0
  %v2199 = vmax.f32 %v2137, 0.0
  %v2200 = vmax.f32 %v2140, 0.0
  %v2201 = vmax.f32 %v2145, 0.0
  %v2202 = vmax.f32 %v2148, 0.0
  %v2203 = vmax.f32 %v2153, 0.0
  %v2204 = vmax.f32 %v2156, 0.0
  %v2205 = vmax.f32 %v2161, 0.0
  %v2206 = vmax.f32 %v2164, 0.0
  %v2207 = vmax.f32 %v2169, 0.0
  %v2208 = vmax.f32 %v2172, 0.0
  %v2209 = vmax.f32 %v2177, 0.0
  %v2210 = vmax.f32 %v2180, 0.0
  %v2211 = vmax.f32 %v2185, 0.0
  %v2212 = vmax.f32 %v2188, 0.0
  %v2213 = vmax.f32 %v2193, 0.0
  %v2214 = vmax.f32 %v2196, 0.0
  %v2215 = vpack.c.bf16 %v2200, %v2199
  %v2216 = vpack.c.bf16 %v2202, %v2201
  %v2217 = vpack.c.bf16 %v2204, %v2203
  %v2218 = vpack.c.bf16 %v2206, %v2205
  %v2219 = vpack.c.bf16 %v2208, %v2207
  %v2220 = vpack.c.bf16 %v2210, %v2209
  %v2221 = vpack.c.bf16 %v2212, %v2211
  %v2222 = vpack.c.bf16 %v2214, %v2213
  %v2223 = vld [vmem:[%s10] sm:$0xf]
  %v2224 = vld [vmem:[%s10 + $0x4] sm:$0xf]
  %v2225 = vld [vmem:[%s10 + $0x8] sm:$0xf]
  %v2226 = vld [vmem:[%s10 + $0xc] sm:$0xf]
  %v2227 = vld [vmem:[%s10 + $0x10] sm:$0xf]
  %v2228 = vld [vmem:[%s10 + $0x14] sm:$0xf]
  %v2229 = vld [vmem:[%s10 + $0x18] sm:$0xf]
  %v2230 = vld [vmem:[%s10 + $0x1c] sm:$0xf]
  %v2231 = vld [vmem:[%s11] sm:$0x1]
  %v2233 = vlaneseq
  %v2234 = vshrl.u32 %v2233, 7
  %v2235 = vsub.s32 0, %v2234
  %v2236 = vrot.slane %v2231, %v2235
  %v2246 = vunpack.c.l.b16 %v2223
  %v2247 = vunpack.c.l.b16 %v2224
  %v2248 = vunpack.c.l.b16 %v2225
  %v2249 = vunpack.c.l.b16 %v2226
  %v2250 = vunpack.c.l.b16 %v2227
  %v2251 = vunpack.c.l.b16 %v2228
  %v2252 = vunpack.c.l.b16 %v2229
  %v2253 = vunpack.c.l.b16 %v2230
  %v2254 = vpack.c.b16 %v2247, %v2246
  %v2255 = vpack.c.b16 %v2249, %v2248
  %v2256 = vpack.c.b16 %v2251, %v2250
  %v2257 = vpack.c.b16 %v2253, %v2252
  %v2263 = vsel %vm2077, %v2215, 0
  %v2266 = vsel %vm2077, %v2216, 0
  %v2269 = vsel %vm2077, %v2217, 0
  %v2272 = vsel %vm2077, %v2218, 0
  %v2275 = vsel %vm2077, %v2219, 0
  %v2278 = vsel %vm2077, %v2220, 0
  %v2281 = vsel %vm2077, %v2221, 0
  %v2284 = vsel %vm2077, %v2222, 0
  %2286 = vmatprep.subr.bf16.mxu0 0
  %2287 = vmatpush1.bf16.msra.mxu0 %v2254
  %2288 = vmatprep.subr.bf16.mxu0 0
  %2289 = vmatpush1.bf16.msra.mxu0 %v2255
  %2290 = vmatprep.subr.bf16.mxu0 0
  %2291 = vmatpush1.bf16.msra.mxu0 %v2256
  %2292 = vmatprep.subr.bf16.mxu0 0
  %2293 = vmatpush1.bf16.msra.mxu0 %v2257
  %2294 = vmatprep.subr.bf16.mxu0 0
  %2295 = vmatpush1.bf16.msra.mxu0 0
  %2296 = vmatprep.subr.bf16.mxu0 0
  %2297 = vmatpush1.bf16.msra.mxu0 0
  %2298 = vmatprep.subr.bf16.mxu0 0
  %2299 = vmatpush1.bf16.msra.mxu0 0
  %2300 = vmatprep.subr.bf16.mxu0 0
  %2301 = vmatpush1.bf16.msra.mxu0 0
  %2302 = vmatprep.subr.bf16.mxu0 0
  %2303 = vmatpush1.bf16.msra.mxu0 0
  %2304 = vmatprep.subr.bf16.mxu0 0
  %2305 = vmatpush1.bf16.msra.mxu0 0
  %2306 = vmatprep.subr.bf16.mxu0 0
  %2307 = vmatpush1.bf16.msra.mxu0 0
  %2308 = vmatprep.subr.bf16.mxu0 0
  %2309 = vmatpush1.bf16.msra.mxu0 0
  %2310 = vmatprep.subr.bf16.mxu0 0
  %2311 = vmatpush1.bf16.msra.mxu0 0
  %2312 = vmatprep.subr.bf16.mxu0 0
  %2313 = vmatpush1.bf16.msra.mxu0 0
  %2314 = vmatprep.subr.bf16.mxu0 0
  %2315 = vmatpush1.bf16.msra.mxu0 0
  %2316 = vmatprep.subr.bf16.mxu0 0
  %2317 = vmatpush1.bf16.msra.mxu0 0
  %2318 = vmatprep.mubr.bf16.mxu0 0
  %2319 = vmatmul.mubr.bf16.gmra.mrb[0].mxu0 %v2263
  %v2320 = vpop.f32.mrb[0].mxu0
  %v2321 = vadd.f32 %v2236, %v2320
  %v2322 = vpop.f32.mrb[0].mxu0
  %v2323 = vpop.f32.mrb[0].mxu0
  %v2324 = vadd.f32 %v2236, %v2323
  %v2325 = vpop.f32.mrb[0].mxu0
  %2326 = vmatprep.mubr.bf16.mxu0 0
  %2327 = vmatmul.mubr.bf16.gmra.mrb[0].mxu0 %v2266
  %v2328 = vpop.f32.mrb[0].mxu0
  %v2329 = vadd.f32 %v2236, %v2328
  %v2330 = vpop.f32.mrb[0].mxu0
  %v2331 = vpop.f32.mrb[0].mxu0
  %v2332 = vadd.f32 %v2236, %v2331
  %v2333 = vpop.f32.mrb[0].mxu0
  %2334 = vmatprep.mubr.bf16.mxu0 0
  %2335 = vmatmul.mubr.bf16.gmra.mrb[0].mxu0 %v2269
  %v2336 = vpop.f32.mrb[0].mxu0
  %v2337 = vadd.f32 %v2236, %v2336
  %v2338 = vpop.f32.mrb[0].mxu0
  %v2339 = vpop.f32.mrb[0].mxu0
  %v2340 = vadd.f32 %v2236, %v2339
  %v2341 = vpop.f32.mrb[0].mxu0
  %2342 = vmatprep.mubr.bf16.mxu0 0
  %2343 = vmatmul.mubr.bf16.gmra.mrb[0].mxu0 %v2272
  %v2344 = vpop.f32.mrb[0].mxu0
  %v2345 = vadd.f32 %v2236, %v2344
  %v2346 = vpop.f32.mrb[0].mxu0
  %v2347 = vpop.f32.mrb[0].mxu0
  %v2348 = vadd.f32 %v2236, %v2347
  %v2349 = vpop.f32.mrb[0].mxu0
  %2350 = vmatprep.mubr.bf16.mxu0 0
  %2351 = vmatmul.mubr.bf16.gmra.mrb[0].mxu0 %v2275
  %v2352 = vpop.f32.mrb[0].mxu0
  %v2353 = vadd.f32 %v2236, %v2352
  %v2354 = vpop.f32.mrb[0].mxu0
  %v2355 = vpop.f32.mrb[0].mxu0
  %v2356 = vadd.f32 %v2236, %v2355
  %v2357 = vpop.f32.mrb[0].mxu0
  %2358 = vmatprep.mubr.bf16.mxu0 0
  %2359 = vmatmul.mubr.bf16.gmra.mrb[0].mxu0 %v2278
  %v2360 = vpop.f32.mrb[0].mxu0
  %v2361 = vadd.f32 %v2236, %v2360
  %v2362 = vpop.f32.mrb[0].mxu0
  %v2363 = vpop.f32.mrb[0].mxu0
  %v2364 = vadd.f32 %v2236, %v2363
  %v2365 = vpop.f32.mrb[0].mxu0
  %2366 = vmatprep.mubr.bf16.mxu0 0
  %2367 = vmatmul.mubr.bf16.gmra.mrb[0].mxu0 %v2281
  %v2368 = vpop.f32.mrb[0].mxu0
  %v2369 = vadd.f32 %v2236, %v2368
  %v2370 = vpop.f32.mrb[0].mxu0
  %v2371 = vpop.f32.mrb[0].mxu0
  %v2372 = vadd.f32 %v2236, %v2371
  %v2373 = vpop.f32.mrb[0].mxu0
  %2374 = vmatprep.mubr.bf16.mxu0 0
  %2375 = vmatmul.mubr.bf16.gmra.mrb[0].mxu0 %v2284
  %v2376 = vpop.f32.mrb[0].mxu0
  %v2377 = vadd.f32 %v2236, %v2376
  %v2378 = vpop.f32.mrb[0].mxu0
  %v2379 = vpop.f32.mrb[0].mxu0
  %v2380 = vadd.f32 %v2236, %v2379
  %v2381 = vpop.f32.mrb[0].mxu0
  %2382 = vdwg.mxu0
  %2383 = vrot.lane.b32.xlu0 %v1589, 125
  %v2384 = vpop.permute.xlu0 %2383
  %2385 = vrot.lane.b32.xlu0 %v1590, 125
  %v2386 = vpop.permute.xlu0 %2385
  %2387 = vrot.lane.b32.xlu0 %v1591, 125
  %v2388 = vpop.permute.xlu0 %2387
  %2389 = vrot.lane.b32.xlu0 %v1592, 125
  %v2390 = vpop.permute.xlu0 %2389
  %2391 = vrot.lane.b32.xlu0 %v1593, 125
  %v2392 = vpop.permute.xlu0 %2391
  %2393 = vrot.lane.b32.xlu0 %v1594, 125
  %v2394 = vpop.permute.xlu0 %2393
  %2395 = vrot.lane.b32.xlu0 %v1595, 125
  %v2396 = vpop.permute.xlu0 %2395
  %2397 = vrot.lane.b32.xlu0 %v1596, 125
  %v2398 = vpop.permute.xlu0 %2397
  %2399 = vrot.lane.b32.xlu0 %v1597, 125
  %v2400 = vpop.permute.xlu0 %2399
  %2401 = vrot.lane.b32.xlu0 %v1598, 125
  %v2402 = vpop.permute.xlu0 %2401
  %2403 = vrot.lane.b32.xlu0 %v1599, 125
  %v2404 = vpop.permute.xlu0 %2403
  %2405 = vrot.lane.b32.xlu0 %v1600, 125
  %v2406 = vpop.permute.xlu0 %2405
  %2407 = vrot.lane.b32.xlu0 %v1601, 125
  %v2408 = vpop.permute.xlu0 %2407
  %2409 = vrot.lane.b32.xlu0 %v1602, 125
  %v2410 = vpop.permute.xlu0 %2409
  %2411 = vrot.lane.b32.xlu0 %v1603, 125
  %v2412 = vpop.permute.xlu0 %2411
  %2413 = vrot.lane.b32.xlu0 %v1604, 125
  %v2414 = vpop.permute.xlu0 %2413
  %v2431 = vadd.f32 %v1589, %v2384
  %v2432 = vadd.f32 %v1590, %v2386
  %v2433 = vadd.f32 %v1591, %v2388
  %v2434 = vadd.f32 %v1592, %v2390
  %v2435 = vadd.f32 %v1593, %v2392
  %v2436 = vadd.f32 %v1594, %v2394
  %v2437 = vadd.f32 %v1595, %v2396
  %v2438 = vadd.f32 %v1596, %v2398
  %v2439 = vadd.f32 %v1597, %v2400
  %v2440 = vadd.f32 %v1598, %v2402
  %v2441 = vadd.f32 %v1599, %v2404
  %v2442 = vadd.f32 %v1600, %v2406
  %v2443 = vadd.f32 %v1601, %v2408
  %v2444 = vadd.f32 %v1602, %v2410
  %v2445 = vadd.f32 %v1603, %v2412
  %v2446 = vadd.f32 %v1604, %v2414
  %v2447 = vmul.f32 %v2431, 0.5
  %v2448 = vmul.f32 %v2432, 0.5
  %v2449 = vmul.f32 %v2433, 0.5
  %v2450 = vmul.f32 %v2434, 0.5
  %v2451 = vmul.f32 %v2435, 0.5
  %v2452 = vmul.f32 %v2436, 0.5
  %v2453 = vmul.f32 %v2437, 0.5
  %v2454 = vmul.f32 %v2438, 0.5
  %v2455 = vmul.f32 %v2439, 0.5
  %v2456 = vmul.f32 %v2440, 0.5
  %v2457 = vmul.f32 %v2441, 0.5
  %v2458 = vmul.f32 %v2442, 0.5
  %v2459 = vmul.f32 %v2443, 0.5
  %v2460 = vmul.f32 %v2444, 0.5
  %v2461 = vmul.f32 %v2445, 0.5
  %v2462 = vmul.f32 %v2446, 0.5
  %2463 = vst [vmem:[%s12] sm:$0xff] 0.0
  %2464 = vst [vmem:[%s12 + $0x8] sm:$0xff] 0.0
  %2465 = vst [vmem:[%s12 + $0x10] sm:$0xff] 0.0
  %2466 = vst [vmem:[%s12 + $0x18] sm:$0xff] 0.0
  %2467 = vst [vmem:[%s12 + $0x20] sm:$0xff] 0.0
  %2468 = vst [vmem:[%s12 + $0x28] sm:$0xff] 0.0
  %2469 = vst [vmem:[%s12 + $0x30] sm:$0xff] 0.0
  %2470 = vst [vmem:[%s12 + $0x38] sm:$0xff] 0.0
  %2471 = vst [vmem:[%s12 + $0x40] sm:$0xff] 0.0
  %2472 = vst [vmem:[%s12 + $0x48] sm:$0xff] 0.0
  %2473 = vst [vmem:[%s12 + $0x50] sm:$0xff] 0.0
  %2474 = vst [vmem:[%s12 + $0x58] sm:$0xff] 0.0
  %2475 = vst [vmem:[%s12 + $0x60] sm:$0xff] 0.0
  %2476 = vst [vmem:[%s12 + $0x68] sm:$0xff] 0.0
  %2477 = vst [vmem:[%s12 + $0x70] sm:$0xff] 0.0
  %2478 = vst [vmem:[%s12 + $0x78] sm:$0xff] 0.0
  %vm2479 = vcmask 130048
  %2480 = vst.msk [vmem:[%s12] sm:$0xff] %vm2479, %v2321
  %2481 = vst.msk [vmem:[%s12 + $0x8] sm:$0xff] %vm2479, %v2324
  %2482 = vst.msk [vmem:[%s12 + $0x10] sm:$0xff] %vm2479, %v2329
  %2483 = vst.msk [vmem:[%s12 + $0x18] sm:$0xff] %vm2479, %v2332
  %2484 = vst.msk [vmem:[%s12 + $0x20] sm:$0xff] %vm2479, %v2337
  %2485 = vst.msk [vmem:[%s12 + $0x28] sm:$0xff] %vm2479, %v2340
  %2486 = vst.msk [vmem:[%s12 + $0x30] sm:$0xff] %vm2479, %v2345
  %2487 = vst.msk [vmem:[%s12 + $0x38] sm:$0xff] %vm2479, %v2348
  %2488 = vst.msk [vmem:[%s12 + $0x40] sm:$0xff] %vm2479, %v2353
  %2489 = vst.msk [vmem:[%s12 + $0x48] sm:$0xff] %vm2479, %v2356
  %2490 = vst.msk [vmem:[%s12 + $0x50] sm:$0xff] %vm2479, %v2361
  %2491 = vst.msk [vmem:[%s12 + $0x58] sm:$0xff] %vm2479, %v2364
  %2492 = vst.msk [vmem:[%s12 + $0x60] sm:$0xff] %vm2479, %v2369
  %2493 = vst.msk [vmem:[%s12 + $0x68] sm:$0xff] %vm2479, %v2372
  %2494 = vst.msk [vmem:[%s12 + $0x70] sm:$0xff] %vm2479, %v2377
  %2495 = vst.msk [vmem:[%s12 + $0x78] sm:$0xff] %vm2479, %v2380
  %2512 = vrot.lane.b32.xlu0 %v2447, 16
  %v2513 = vpop.permute.xlu0 %2512
  %2514 = vrot.lane.b32.xlu0 %v2448, 16
  %v2515 = vpop.permute.xlu0 %2514
  %2516 = vrot.lane.b32.xlu0 %v2449, 16
  %v2517 = vpop.permute.xlu0 %2516
  %2518 = vrot.lane.b32.xlu0 %v2450, 16
  %v2519 = vpop.permute.xlu0 %2518
  %2520 = vrot.lane.b32.xlu0 %v2451, 16
  %v2521 = vpop.permute.xlu0 %2520
  %2522 = vrot.lane.b32.xlu0 %v2452, 16
  %v2523 = vpop.permute.xlu0 %2522
  %2524 = vrot.lane.b32.xlu0 %v2453, 16
  %v2525 = vpop.permute.xlu0 %2524
  %2526 = vrot.lane.b32.xlu0 %v2454, 16
  %v2527 = vpop.permute.xlu0 %2526
  %2528 = vrot.lane.b32.xlu0 %v2455, 16
  %v2529 = vpop.permute.xlu0 %2528
  %2530 = vrot.lane.b32.xlu0 %v2456, 16
  %v2531 = vpop.permute.xlu0 %2530
  %2532 = vrot.lane.b32.xlu0 %v2457, 16
  %v2533 = vpop.permute.xlu0 %2532
  %2534 = vrot.lane.b32.xlu0 %v2458, 16
  %v2535 = vpop.permute.xlu0 %2534
  %2536 = vrot.lane.b32.xlu0 %v2459, 16
  %v2537 = vpop.permute.xlu0 %2536
  %2538 = vrot.lane.b32.xlu0 %v2460, 16
  %v2539 = vpop.permute.xlu0 %2538
  %2540 = vrot.lane.b32.xlu0 %v2461, 16
  %v2541 = vpop.permute.xlu0 %2540
  %2542 = vrot.lane.b32.xlu0 %v2462, 16
  %v2543 = vpop.permute.xlu0 %2542
  %vm2560 = vcmask 154752
  %2561 = vst.msk [vmem:[%s12] sm:$0xff] %vm2560, %v2513
  %2562 = vst.msk [vmem:[%s12 + $0x8] sm:$0xff] %vm2560, %v2515
  %2563 = vst.msk [vmem:[%s12 + $0x10] sm:$0xff] %vm2560, %v2517
  %2564 = vst.msk [vmem:[%s12 + $0x18] sm:$0xff] %vm2560, %v2519
  %2565 = vst.msk [vmem:[%s12 + $0x20] sm:$0xff] %vm2560, %v2521
  %2566 = vst.msk [vmem:[%s12 + $0x28] sm:$0xff] %vm2560, %v2523
  %2567 = vst.msk [vmem:[%s12 + $0x30] sm:$0xff] %vm2560, %v2525
  %2568 = vst.msk [vmem:[%s12 + $0x38] sm:$0xff] %vm2560, %v2527
  %2569 = vst.msk [vmem:[%s12 + $0x40] sm:$0xff] %vm2560, %v2529
  %2570 = vst.msk [vmem:[%s12 + $0x48] sm:$0xff] %vm2560, %v2531
  %2571 = vst.msk [vmem:[%s12 + $0x50] sm:$0xff] %vm2560, %v2533
  %2572 = vst.msk [vmem:[%s12 + $0x58] sm:$0xff] %vm2560, %v2535
  %2573 = vst.msk [vmem:[%s12 + $0x60] sm:$0xff] %vm2560, %v2537
  %2574 = vst.msk [vmem:[%s12 + $0x68] sm:$0xff] %vm2560, %v2539
  %2575 = vst.msk [vmem:[%s12 + $0x70] sm:$0xff] %vm2560, %v2541
  %2576 = vst.msk [vmem:[%s12 + $0x78] sm:$0xff] %vm2560, %v2543
  // Predicated region
  $region50: #{_sagn_jit.1} parent=0 // pred_check
    _
  $region51: #{_sagn_jit.1} parent=0 // pred_check_branch
    %2578 = sbr.rel (0) target = $region53
  $region52: #{_sagn_jit.1} parent=0 // pred_region
    _
  $region53: #{_sagn_jit.1} parent=0 // pred_fallthru
    _
  // Predicated region
  $region54: #{_sagn_jit.1} parent=0 // pred_check
    _
  $region55: #{_sagn_jit.1} parent=0 // pred_check_branch
    %2580 = sbr.rel (0) target = $region57
  $region56: #{_sagn_jit.1} parent=0 // pred_region
    _
  $region57: #{_sagn_jit.1} parent=0 // pred_fallthru
    _

</llo_original>
